<compile_context>
chip_gen: v7x
topology: tpu7x:2x2x1
jax: 0.10.0
libtpu: 0.0.40
codegen_flags: <defaults>
</compile_context>

<pallas_src>
import math
import functools

import jax
import jax.numpy as jnp
from jax import lax
from jax.experimental import pallas as pl
from jax.experimental.pallas import tpu as pltpu


# ----------------------------------------------------------------------------
# Tiling helpers
# ----------------------------------------------------------------------------
def _round_up(x, m):
    return (x + m - 1) // m * m


def _choose_tile(dim, max_tile, align):
    """Largest tile that is a multiple of `align`, divides round_up(dim, align)
    and is <= max_tile.  Returns (tile, padded_dim)."""
    padded = _round_up(dim, align)
    best = align
    t = align
    while t <= min(max_tile, padded):
        if padded % t == 0:
            best = t
        t += align
    return best, padded


def _seq_tile(seq, max_tile):
    assert seq % 8 == 0, "sequence length must be a multiple of 8"
    best = 8
    t = 8
    while t <= min(max_tile, seq):
        if seq % t == 0:
            best = t
        t += 8
    return best


# ----------------------------------------------------------------------------
# Tiled linear kernel:  y = x @ Wt + b   (Wt is K-major [K, N], bf16)
# ----------------------------------------------------------------------------
def _linear_kernel(x_ref, w_ref, b_ref, o_ref, acc_ref):
    k = pl.program_id(2)

    @pl.when(k == 0)
    def _():
        # Initialize the accumulator with the bias (no zero-fill + epilogue add).
        acc_ref[...] = jnp.broadcast_to(b_ref[...], acc_ref.shape)

    # bf16 x bf16 -> f32 accumulation on the MXU (weights pre-transposed, no .T).
    acc_ref[...] += jnp.dot(x_ref[...], w_ref[...],
                            preferred_element_type=jnp.float32)

    @pl.when(k == pl.num_programs(2) - 1)
    def _():
        o_ref[...] = acc_ref[...].astype(o_ref.dtype)


def linear_pallas(x2d, wt_bf16, b_row, *, tm=256, tn=256, tk=512,
                  out_dtype=jnp.bfloat16):
    """x2d: [M, K]; wt_bf16: [K, N] bf16; b_row: [1, N] f32.
    Arbitrary M/N/K handled by zero-padding to tile multiples (no full-dim
    fallback), result sliced back to [M, N]."""
    M, K = x2d.shape
    Kw, N = wt_bf16.shape
    assert K == Kw
    tm, Mp = _choose_tile(M, tm, 8)
    tn, Np = _choose_tile(N, tn, 128)
    tk, Kp = _choose_tile(K, tk, 128)

    x = x2d.astype(jnp.bfloat16)
    if (Mp, Kp) != (M, K):
        x = jnp.pad(x, ((0, Mp - M), (0, Kp - K)))
    w = wt_bf16
    if (Kp, Np) != (K, N):
        w = jnp.pad(w, ((0, Kp - K), (0, Np - N)))
    b = b_row
    if Np != N:
        b = jnp.pad(b, ((0, 0), (0, Np - N)))

    grid = (Mp // tm, Np // tn, Kp // tk)
    out = pl.pallas_call(
        _linear_kernel,
        out_shape=jax.ShapeDtypeStruct((Mp, Np), out_dtype),
        grid=grid,
        in_specs=[
            pl.BlockSpec((tm, tk), lambda i, j, k: (i, k)),
            pl.BlockSpec((tk, tn), lambda i, j, k: (k, j)),
            pl.BlockSpec((1, tn), lambda i, j, k: (0, j)),
        ],
        out_specs=pl.BlockSpec((tm, tn), lambda i, j, k: (i, j)),
        scratch_shapes=[pltpu.VMEM((tm, tn), jnp.float32)],
        compiler_params=pltpu.CompilerParams(
            dimension_semantics=("parallel", "parallel", "arbitrary")),
    )(x, w, b)
    if (Mp, Np) != (M, N):
        out = out[:M, :N]
    return out


# ----------------------------------------------------------------------------
# Flash-style attention kernel with split nope/rope QK contraction.
# All operands are 2-D [B*S, features]; heads are addressed via 128-lane column
# blocks in the index_map, so no layout transposes are ever materialized.
# grid = (B, H, S//tq, S//tkv); the KV axis is the online-softmax reduction.
# ----------------------------------------------------------------------------
def _flash_attn_kernel(qn_ref, qr_ref, kn_ref, kr_ref, v_ref, o_ref,
                       m_sc, l_sc, acc_sc):
    ki = pl.program_id(3)

    @pl.when(ki == 0)
    def _():
        m_sc[...] = jnp.full_like(m_sc, -jnp.inf)
        l_sc[...] = jnp.zeros_like(l_sc)
        acc_sc[...] = jnp.zeros_like(acc_sc)

    dn = (((1,), (1,)), ((), ()))   # contract last dims, no transpose materialized
    s = lax.dot_general(qn_ref[...], kn_ref[...], dn,
                        preferred_element_type=jnp.float32)
    s = s + lax.dot_general(qr_ref[...], kr_ref[...], dn,
                            preferred_element_type=jnp.float32)
    # NOTE: 1/sqrt(head_dim + rope_dim) is folded into the q-projection weights.

    m_prev = m_sc[...]
    m_new = jnp.maximum(m_prev, jnp.max(s, axis=-1, keepdims=True))
    alpha = jnp.exp(m_prev - m_new)
    p = jnp.exp(s - m_new)                                   # f32 softmax math
    l_sc[...] = alpha * l_sc[...] + jnp.sum(p, axis=-1, keepdims=True)
    acc_sc[...] = alpha * acc_sc[...] + jnp.dot(
        p.astype(v_ref.dtype), v_ref[...], preferred_element_type=jnp.float32)
    m_sc[...] = m_new

    @pl.when(ki == pl.num_programs(3) - 1)
    def _():
        inv_l = pl.reciprocal(l_sc[...], approx=True)
        o_ref[...] = (acc_sc[...] * inv_l).astype(o_ref.dtype)


def flash_attention_pallas(qf, q_rope, kv, k_rope, *, nhead, head_dim, rope_pad,
                           v_col_block, batch, seq, tq=256, tkv=256):
    """qf:[B*S, >=H*Dh] (q-nope at col block h); q_rope:[B*S, H*Drp];
    kv:[B*S, >=2*H*Dh] (k at col block h, v at col block v_col_block+h);
    k_rope:[B*S, Drp] shared across heads.  Returns [B*S, H*Dh] bf16."""
    Dh = head_dim
    # TODO(synk): head dims that are not a lane multiple would need per-head padding.
    assert Dh % 128 == 0, "flash_attention_pallas requires head_dim % 128 == 0"
    M = batch * seq
    tq = _seq_tile(seq, tq)
    tkv = _seq_tile(seq, tkv)
    nq, nk = seq // tq, seq // tkv
    grid = (batch, nhead, nq, nk)
    return pl.pallas_call(
        _flash_attn_kernel,
        out_shape=jax.ShapeDtypeStruct((M, nhead * Dh), jnp.bfloat16),
        grid=grid,
        in_specs=[
            pl.BlockSpec((tq, Dh), lambda b, h, qi, ki: (b * nq + qi, h)),
            pl.BlockSpec((tq, rope_pad), lambda b, h, qi, ki: (b * nq + qi, h)),
            pl.BlockSpec((tkv, Dh), lambda b, h, qi, ki: (b * nk + ki, h)),
            # k_rope: shared across heads -> column block fixed to 0
            pl.BlockSpec((tkv, rope_pad), lambda b, h, qi, ki: (b * nk + ki, 0)),
            pl.BlockSpec((tkv, Dh),
                         lambda b, h, qi, ki: (b * nk + ki, v_col_block + h)),
        ],
        out_specs=pl.BlockSpec((tq, Dh), lambda b, h, qi, ki: (b * nq + qi, h)),
        scratch_shapes=[
            pltpu.VMEM((tq, 1), jnp.float32),    # running max
            pltpu.VMEM((tq, 1), jnp.float32),    # running denom
            pltpu.VMEM((tq, Dh), jnp.float32),   # running output accumulator
        ],
        compiler_params=pltpu.CompilerParams(
            dimension_semantics=("parallel", "parallel", "parallel", "arbitrary")),
    )(qf, q_rope, kv, k_rope, kv)


# ----------------------------------------------------------------------------
# RoPE (glue, positions along the seq axis of [B, S, H, D]).
# TODO(synk): `rotary_emb` is undefined in the reference module; standard
#             rotate-half rotary embeddings are assumed here.
# ----------------------------------------------------------------------------
def rope_bshd(x):
    B, S, H, Dd = x.shape
    half = Dd // 2
    pos = jnp.arange(S, dtype=jnp.float32)
    inv_freq = 1.0 / (10000.0 ** (jnp.arange(0, half, dtype=jnp.float32) / half))
    ang = pos[:, None] * inv_freq[None, :]                      # [S, D/2]
    cos = jnp.cos(ang)[None, :, None, :]
    sin = jnp.sin(ang)[None, :, None, :]
    x1, x2 = x[..., :half].astype(jnp.float32), x[..., half:].astype(jnp.float32)
    return jnp.concatenate([x1 * cos - x2 * sin, x1 * sin + x2 * cos], axis=-1)


# ----------------------------------------------------------------------------
# Parameter init (PyTorch-Linear-like uniform) + one-time fused/padded prep.
# ----------------------------------------------------------------------------
def init_linear(key, out_f, in_f):
    kw, kb = jax.random.split(key)
    bound = 1.0 / math.sqrt(in_f)
    w = jax.random.uniform(kw, (out_f, in_f), jnp.float32, -bound, bound)
    b = jax.random.uniform(kb, (out_f,), jnp.float32, -bound, bound)
    return w, b


def init_params(key, d_model, nhead, rope_dim):
    head_dim = d_model // nhead
    kv_c = d_model // 4
    q_c = kv_c * 2
    keys = jax.random.split(key, 8)
    p = {}
    p["kv_down_w"], p["kv_down_b"] = init_linear(keys[0], kv_c, d_model)
    p["q_down_w"], p["q_down_b"] = init_linear(keys[1], q_c, d_model)
    p["k_up_w"], p["k_up_b"] = init_linear(keys[2], head_dim * nhead, kv_c)
    p["v_up_w"], p["v_up_b"] = init_linear(keys[3], head_dim * nhead, kv_c)
    p["q_up_w"], p["q_up_b"] = init_linear(keys[4], head_dim * nhead, q_c)
    p["o_w"], p["o_b"] = init_linear(keys[5], d_model, d_model)
    p["k_up_rope_w"], p["k_up_rope_b"] = init_linear(keys[6], rope_dim, d_model)
    p["q_up_rope_w"], p["q_up_rope_b"] = init_linear(keys[7], rope_dim * nhead, q_c)
    return p


def mla_layout(d_model, nhead, rope_dim):
    head_dim = d_model // nhead
    kv_c = d_model // 4
    q_c = kv_c * 2
    return dict(
        head_dim=head_dim, kv_c=kv_c, q_c=q_c,
        kv_c_p=_round_up(kv_c, 128), q_c_p=_round_up(q_c, 128),
        rope_p=_round_up(rope_dim, 128),
        hdh=nhead * head_dim, hdh_p=_round_up(nhead * head_dim, 128),
        hdr=nhead * rope_dim, hdr_p=_round_up(nhead * rope_dim, 128),
    )


def prepare_params(p, d_model, nhead, rope_dim):
    """Fuse same-input projections, pad every segment boundary to a 128-lane
    multiple, pre-transpose to K-major [K, N], fold the softmax scale into the
    q projections, cast weights to bf16 once."""
    lay = mla_layout(d_model, nhead, rope_dim)
    scale = 1.0 / math.sqrt(lay["head_dim"] + rope_dim)

    def seg(w, b, out_p, k_p):
        out_f, k_in = w.shape
        wt = jnp.zeros((k_p, out_p), jnp.float32).at[:k_in, :out_f].set(w.T)
        bb = jnp.zeros((1, out_p), jnp.float32).at[0, :out_f].set(b)
        return wt, bb

    def fuse(parts):
        ws, bs = zip(*parts)
        return jnp.concatenate(ws, 1).astype(jnp.bfloat16), jnp.concatenate(bs, 1)

    down = fuse([
        seg(p["kv_down_w"], p["kv_down_b"], lay["kv_c_p"], d_model),
        seg(p["q_down_w"], p["q_down_b"], lay["q_c_p"], d_model),
        seg(p["k_up_rope_w"], p["k_up_rope_b"], lay["rope_p"], d_model),
    ])
    kv = fuse([
        seg(p["k_up_w"], p["k_up_b"], lay["hdh_p"], lay["kv_c_p"]),
        seg(p["v_up_w"], p["v_up_b"], lay["hdh_p"], lay["kv_c_p"]),
    ])
    q = fuse([
        seg(p["q_up_w"] * scale, p["q_up_b"] * scale, lay["hdh_p"], lay["q_c_p"]),
        seg(p["q_up_rope_w"] * scale, p["q_up_rope_b"] * scale,
            lay["hdr_p"], lay["q_c_p"]),
    ])
    ow, ob = seg(p["o_w"], p["o_b"], _round_up(d_model, 128), d_model)
    return {"down": down, "kv": kv, "q": q, "o": (ow.astype(jnp.bfloat16), ob)}


# ----------------------------------------------------------------------------
# MLA_simple forward
# ----------------------------------------------------------------------------
def mla_forward(pp, x, *, d_model, nhead, rope_dim):
    lay = mla_layout(d_model, nhead, rope_dim)
    B, S, D = x.shape
    M = B * S
    Dh, Dr = lay["head_dim"], rope_dim
    x2d = x.reshape(M, D)

    # Fused down-projections + k_up_rope (all consume x): one pass over x.
    down = linear_pallas(x2d, *pp["down"])       # bf16 [M, kv_c_p + q_c_p + rope_p]
    o1 = lay["kv_c_p"]
    o2 = o1 + lay["q_c_p"]
    c_vk = down[:, :o1]                          # padded width matches kv-weight K
    c_q = down[:, o1:o2]                         # padded width matches q-weight K
    k_rope = down[:, o2:o2 + Dr]

    # Fused up-projections: c_vk read once, c_q read once.
    kv = linear_pallas(c_vk, *pp["kv"])          # bf16 [M, 2*hdh_p]  ([k | v])
    qf = linear_pallas(c_q, *pp["q"])            # bf16 [M, hdh_p + hdr_p]  ([q | q_rope])
    q_rope = qf[:, lay["hdh_p"]:lay["hdh_p"] + lay["hdr"]]

    # RoPE on the rope parts (positions along S); heads stay interleaved in lanes.
    q_rope = rope_bshd(q_rope.reshape(B, S, nhead, Dr))
    k_rope = rope_bshd(k_rope.reshape(B, S, 1, Dr))
    rope_pad = Dr if (nhead == 1 or Dr % 128 == 0) else _round_up(Dr, 128)
    if rope_pad != Dr:
        q_rope = jnp.pad(q_rope, ((0, 0), (0, 0), (0, 0), (0, rope_pad - Dr)))
        k_rope = jnp.pad(k_rope, ((0, 0), (0, 0), (0, 0), (0, rope_pad - Dr)))
    q_rope = q_rope.reshape(M, nhead * rope_pad).astype(jnp.bfloat16)
    k_rope = k_rope.reshape(M, rope_pad).astype(jnp.bfloat16)

    # TODO(synk): optional attention mask from the reference is not implemented.
    attn = flash_attention_pallas(
        qf, q_rope, kv, k_rope,
        nhead=nhead, head_dim=Dh, rope_pad=rope_pad,
        v_col_block=lay["hdh_p"] // Dh, batch=B, seq=S)      # bf16 [M, H*Dh]

    out = linear_pallas(attn, *pp["o"], out_dtype=jnp.float32)[:, :d_model]
    # dropout: identity (inference / deterministic)
    return out.reshape(B, S, d_model)


if __name__ == "__main__":
    # Small but lane-aligned config: head_dim = rope_dim = 128 so per-head column
    # blocks are 128-lane aligned (the attention kernel asserts this).
    B, S = 2, 8
    d_model, nhead, rope_dim = 256, 2, 128

    key = jax.random.PRNGKey(0)
    kp, kx = jax.random.split(key)
    params = init_params(kp, d_model, nhead, rope_dim)
    pp = prepare_params(params, d_model, nhead, rope_dim)
    x = jax.random.normal(kx, (B, S, d_model), jnp.float32)

    fwd = jax.jit(functools.partial(mla_forward, d_model=d_model, nhead=nhead,
                                    rope_dim=rope_dim))
    out = fwd(pp, x)
    jax.block_until_ready(out)
    assert out.shape == (B, S, d_model)
    assert bool(jnp.all(jnp.isfinite(out)))
    print("KERNEL_OK")
</pallas_src>

<mosaic_0001>
module attributes {stable_mosaic.version = 11 : i64} {
  func.func @_linear_kernel(%arg0: i32, %arg1: i32, %arg2: i32, %arg3: memref<16x256xbf16, #tpu.memory_space<vmem>>, %arg4: memref<256x128xbf16, #tpu.memory_space<vmem>>, %arg5: memref<1x128xf32, #tpu.memory_space<vmem>>, %arg6: memref<16x128xbf16, #tpu.memory_space<vmem>>, %arg7: memref<16x128xf32, #tpu.memory_space<vmem>>) attributes {dimension_semantics = [#tpu.dimension_semantics<parallel>, #tpu.dimension_semantics<parallel>, #tpu.dimension_semantics<arbitrary>], iteration_bounds = array<i64: 1, 3, 1>, scalar_prefetch = 0 : i64, scratch_operands = 1 : i64, tpu.core_type = #tpu.core_type<tc>, window_params = [{transform_indices = @transform_0, window_bounds = array<i64: 16, 256>}, {transform_indices = @transform_1, window_bounds = array<i64: 256, 128>}, {transform_indices = @transform_2, window_bounds = array<i64: 1, 128>}, {transform_indices = @transform_3, window_bounds = array<i64: 16, 128>}]} {
    %c0_i32 = arith.constant 0 : i32
    %0 = arith.cmpi eq, %arg2, %c0_i32 : i32
    %1 = arith.extui %0 : i1 to i32
    %c0_i32_0 = arith.constant 0 : i32
    %2 = arith.cmpi ne, %1, %c0_i32_0 : i32
    scf.if %2 {
      %c0_10 = arith.constant 0 : index
      %c0_11 = arith.constant 0 : index
      %12 = vector.load %arg5[%c0_10, %c0_11] : memref<1x128xf32, #tpu.memory_space<vmem>>, vector<1x128xf32>
      %13 = vector.shape_cast %12 : vector<1x128xf32> to vector<1x128xf32>
      %14 = vector.broadcast %13 : vector<1x128xf32> to vector<16x128xf32>
      %c0_12 = arith.constant 0 : index
      %c0_13 = arith.constant 0 : index
      %15 = vector.load %arg7[%c0_12, %c0_13] : memref<16x128xf32, #tpu.memory_space<vmem>>, vector<16x128xf32>
      tpu.vector_store %arg7[%c0_12, %c0_13], %14 {strides = array<i32>} : memref<16x128xf32, #tpu.memory_space<vmem>>, vector<16x128xf32>,
    } else {
    }
    %c0 = arith.constant 0 : index
    %c0_1 = arith.constant 0 : index
    %3 = vector.load %arg7[%c0, %c0_1] : memref<16x128xf32, #tpu.memory_space<vmem>>, vector<16x128xf32>
    %c0_2 = arith.constant 0 : index
    %c0_3 = arith.constant 0 : index
    %4 = vector.load %arg3[%c0_2, %c0_3] : memref<16x256xbf16, #tpu.memory_space<vmem>>, vector<16x256xbf16>
    %c0_4 = arith.constant 0 : index
    %c0_5 = arith.constant 0 : index
    %5 = vector.load %arg4[%c0_4, %c0_5] : memref<256x128xbf16, #tpu.memory_space<vmem>>, vector<256x128xbf16>
    %cst = arith.constant dense<0.000000e+00> : vector<16x128xf32>
    %6 = tpu.matmul %4, %5, %cst {dimension_numbers = #tpu.dot_dimension_numbers<[1], [0], [0], [1], [0, 0, 1, 1], [], []>} : vector<16x256xbf16>, vector<256x128xbf16>, vector<16x128xf32> -> vector<16x128xf32>
    %7 = arith.addf %3, %6 : vector<16x128xf32>
    %c0_6 = arith.constant 0 : index
    %c0_7 = arith.constant 0 : index
    %8 = vector.load %arg7[%c0_6, %c0_7] : memref<16x128xf32, #tpu.memory_space<vmem>>, vector<16x128xf32>
    tpu.vector_store %arg7[%c0_6, %c0_7], %7 {strides = array<i32>} : memref<16x128xf32, #tpu.memory_space<vmem>>, vector<16x128xf32>,
    %c0_i32_8 = arith.constant 0 : i32
    %9 = arith.cmpi eq, %arg2, %c0_i32_8 : i32
    %10 = arith.extui %9 : i1 to i32
    %c0_i32_9 = arith.constant 0 : i32
    %11 = arith.cmpi ne, %10, %c0_i32_9 : i32
    scf.if %11 {
      %c0_10 = arith.constant 0 : index
      %c0_11 = arith.constant 0 : index
      %12 = vector.load %arg7[%c0_10, %c0_11] : memref<16x128xf32, #tpu.memory_space<vmem>>, vector<16x128xf32>
      %13 = arith.truncf %12 : vector<16x128xf32> to vector<16x128xbf16>
      %c0_12 = arith.constant 0 : index
      %c0_13 = arith.constant 0 : index
      %14 = vector.load %arg6[%c0_12, %c0_13] : memref<16x128xbf16, #tpu.memory_space<vmem>>, vector<16x128xbf16>
      tpu.vector_store %arg6[%c0_12, %c0_13], %13 {strides = array<i32>} : memref<16x128xbf16, #tpu.memory_space<vmem>>, vector<16x128xbf16>,
    } else {
    }
    return
  }
  func.func @transform_0(%arg0: i32, %arg1: i32, %arg2: i32) -> (i32, i32) {
    %c0_i32 = arith.constant 0 : i32
    return %arg0, %arg2 : i32, i32
  }
  func.func @transform_1(%arg0: i32, %arg1: i32, %arg2: i32) -> (i32, i32) {
    %c0_i32 = arith.constant 0 : i32
    return %arg2, %arg1 : i32, i32
  }
  func.func @transform_2(%arg0: i32, %arg1: i32, %arg2: i32) -> (i32, i32) {
    %c0_i32 = arith.constant 0 : i32
    %c0_i32_0 = arith.constant 0 : i32
    return %c0_i32, %arg1 : i32, i32
  }
  func.func @transform_3(%arg0: i32, %arg1: i32, %arg2: i32) -> (i32, i32) {
    %c0_i32 = arith.constant 0 : i32
    return %arg0, %arg1 : i32, i32
  }
}

module attributes {stable_mosaic.version = 11 : i64} {
  func.func @_linear_kernel(%arg0: i32, %arg1: i32, %arg2: i32, %arg3: memref<16x128xbf16, #tpu.memory_space<vmem>>, %arg4: memref<128x256xbf16, #tpu.memory_space<vmem>>, %arg5: memref<1x256xf32, #tpu.memory_space<vmem>>, %arg6: memref<16x256xbf16, #tpu.memory_space<vmem>>, %arg7: memref<16x256xf32, #tpu.memory_space<vmem>>) attributes {dimension_semantics = [#tpu.dimension_semantics<parallel>, #tpu.dimension_semantics<parallel>, #tpu.dimension_semantics<arbitrary>], iteration_bounds = array<i64: 1, 2, 1>, scalar_prefetch = 0 : i64, scratch_operands = 1 : i64, tpu.core_type = #tpu.core_type<tc>, window_params = [{transform_indices = @transform_0, window_bounds = array<i64: 16, 128>}, {transform_indices = @transform_1, window_bounds = array<i64: 128, 256>}, {transform_indices = @transform_2, window_bounds = array<i64: 1, 256>}, {transform_indices = @transform_3, window_bounds = array<i64: 16, 256>}]} {
    %c0_i32 = arith.constant 0 : i32
    %0 = arith.cmpi eq, %arg2, %c0_i32 : i32
    %1 = arith.extui %0 : i1 to i32
    %c0_i32_0 = arith.constant 0 : i32
    %2 = arith.cmpi ne, %1, %c0_i32_0 : i32
    scf.if %2 {
      %c0_10 = arith.constant 0 : index
      %c0_11 = arith.constant 0 : index
      %12 = vector.load %arg5[%c0_10, %c0_11] : memref<1x256xf32, #tpu.memory_space<vmem>>, vector<1x256xf32>
      %13 = vector.shape_cast %12 : vector<1x256xf32> to vector<1x256xf32>
      %14 = vector.broadcast %13 : vector<1x256xf32> to vector<16x256xf32>
      %c0_12 = arith.constant 0 : index
      %c0_13 = arith.constant 0 : index
      %15 = vector.load %arg7[%c0_12, %c0_13] : memref<16x256xf32, #tpu.memory_space<vmem>>, vector<16x256xf32>
      tpu.vector_store %arg7[%c0_12, %c0_13], %14 {strides = array<i32>} : memref<16x256xf32, #tpu.memory_space<vmem>>, vector<16x256xf32>,
    } else {
    }
    %c0 = arith.constant 0 : index
    %c0_1 = arith.constant 0 : index
    %3 = vector.load %arg7[%c0, %c0_1] : memref<16x256xf32, #tpu.memory_space<vmem>>, vector<16x256xf32>
    %c0_2 = arith.constant 0 : index
    %c0_3 = arith.constant 0 : index
    %4 = vector.load %arg3[%c0_2, %c0_3] : memref<16x128xbf16, #tpu.memory_space<vmem>>, vector<16x128xbf16>
    %c0_4 = arith.constant 0 : index
    %c0_5 = arith.constant 0 : index
    %5 = vector.load %arg4[%c0_4, %c0_5] : memref<128x256xbf16, #tpu.memory_space<vmem>>, vector<128x256xbf16>
    %cst = arith.constant dense<0.000000e+00> : vector<16x256xf32>
    %6 = tpu.matmul %4, %5, %cst {dimension_numbers = #tpu.dot_dimension_numbers<[1], [0], [0], [1], [0, 0, 1, 1], [], []>} : vector<16x128xbf16>, vector<128x256xbf16>, vector<16x256xf32> -> vector<16x256xf32>
    %7 = arith.addf %3, %6 : vector<16x256xf32>
    %c0_6 = arith.constant 0 : index
    %c0_7 = arith.constant 0 : index
    %8 = vector.load %arg7[%c0_6, %c0_7] : memref<16x256xf32, #tpu.memory_space<vmem>>, vector<16x256xf32>
    tpu.vector_store %arg7[%c0_6, %c0_7], %7 {strides = array<i32>} : memref<16x256xf32, #tpu.memory_space<vmem>>, vector<16x256xf32>,
    %c0_i32_8 = arith.constant 0 : i32
    %9 = arith.cmpi eq, %arg2, %c0_i32_8 : i32
    %10 = arith.extui %9 : i1 to i32
    %c0_i32_9 = arith.constant 0 : i32
    %11 = arith.cmpi ne, %10, %c0_i32_9 : i32
    scf.if %11 {
      %c0_10 = arith.constant 0 : index
      %c0_11 = arith.constant 0 : index
      %12 = vector.load %arg7[%c0_10, %c0_11] : memref<16x256xf32, #tpu.memory_space<vmem>>, vector<16x256xf32>
      %13 = arith.truncf %12 : vector<16x256xf32> to vector<16x256xbf16>
      %c0_12 = arith.constant 0 : index
      %c0_13 = arith.constant 0 : index
      %14 = vector.load %arg6[%c0_12, %c0_13] : memref<16x256xbf16, #tpu.memory_space<vmem>>, vector<16x256xbf16>
      tpu.vector_store %arg6[%c0_12, %c0_13], %13 {strides = array<i32>} : memref<16x256xbf16, #tpu.memory_space<vmem>>, vector<16x256xbf16>,
    } else {
    }
    return
  }
  func.func @transform_0(%arg0: i32, %arg1: i32, %arg2: i32) -> (i32, i32) {
    %c0_i32 = arith.constant 0 : i32
    return %arg0, %arg2 : i32, i32
  }
  func.func @transform_1(%arg0: i32, %arg1: i32, %arg2: i32) -> (i32, i32) {
    %c0_i32 = arith.constant 0 : i32
    return %arg2, %arg1 : i32, i32
  }
  func.func @transform_2(%arg0: i32, %arg1: i32, %arg2: i32) -> (i32, i32) {
    %c0_i32 = arith.constant 0 : i32
    %c0_i32_0 = arith.constant 0 : i32
    return %c0_i32, %arg1 : i32, i32
  }
  func.func @transform_3(%arg0: i32, %arg1: i32, %arg2: i32) -> (i32, i32) {
    %c0_i32 = arith.constant 0 : i32
    return %arg0, %arg1 : i32, i32
  }
}

module attributes {stable_mosaic.version = 11 : i64} {
  func.func @_linear_kernel(%arg0: i32, %arg1: i32, %arg2: i32, %arg3: memref<16x256xbf16, #tpu.memory_space<vmem>>, %arg4: memref<256x256xbf16, #tpu.memory_space<vmem>>, %arg5: memref<1x256xf32, #tpu.memory_space<vmem>>, %arg6: memref<16x256xf32, #tpu.memory_space<vmem>>, %arg7: memref<16x256xf32, #tpu.memory_space<vmem>>) attributes {dimension_semantics = [#tpu.dimension_semantics<parallel>, #tpu.dimension_semantics<parallel>, #tpu.dimension_semantics<arbitrary>], iteration_bounds = array<i64: 1, 1, 1>, scalar_prefetch = 0 : i64, scratch_operands = 1 : i64, tpu.core_type = #tpu.core_type<tc>, window_params = [{transform_indices = @transform_0, window_bounds = array<i64: 16, 256>}, {transform_indices = @transform_1, window_bounds = array<i64: 256, 256>}, {transform_indices = @transform_2, window_bounds = array<i64: 1, 256>}, {transform_indices = @transform_3, window_bounds = array<i64: 16, 256>}]} {
    %c0_i32 = arith.constant 0 : i32
    %0 = arith.cmpi eq, %arg2, %c0_i32 : i32
    %1 = arith.extui %0 : i1 to i32
    %c0_i32_0 = arith.constant 0 : i32
    %2 = arith.cmpi ne, %1, %c0_i32_0 : i32
    scf.if %2 {
      %c0_10 = arith.constant 0 : index
      %c0_11 = arith.constant 0 : index
      %12 = vector.load %arg5[%c0_10, %c0_11] : memref<1x256xf32, #tpu.memory_space<vmem>>, vector<1x256xf32>
      %13 = vector.shape_cast %12 : vector<1x256xf32> to vector<1x256xf32>
      %14 = vector.broadcast %13 : vector<1x256xf32> to vector<16x256xf32>
      %c0_12 = arith.constant 0 : index
      %c0_13 = arith.constant 0 : index
      %15 = vector.load %arg7[%c0_12, %c0_13] : memref<16x256xf32, #tpu.memory_space<vmem>>, vector<16x256xf32>
      tpu.vector_store %arg7[%c0_12, %c0_13], %14 {strides = array<i32>} : memref<16x256xf32, #tpu.memory_space<vmem>>, vector<16x256xf32>,
    } else {
    }
    %c0 = arith.constant 0 : index
    %c0_1 = arith.constant 0 : index
    %3 = vector.load %arg7[%c0, %c0_1] : memref<16x256xf32, #tpu.memory_space<vmem>>, vector<16x256xf32>
    %c0_2 = arith.constant 0 : index
    %c0_3 = arith.constant 0 : index
    %4 = vector.load %arg3[%c0_2, %c0_3] : memref<16x256xbf16, #tpu.memory_space<vmem>>, vector<16x256xbf16>
    %c0_4 = arith.constant 0 : index
    %c0_5 = arith.constant 0 : index
    %5 = vector.load %arg4[%c0_4, %c0_5] : memref<256x256xbf16, #tpu.memory_space<vmem>>, vector<256x256xbf16>
    %cst = arith.constant dense<0.000000e+00> : vector<16x256xf32>
    %6 = tpu.matmul %4, %5, %cst {dimension_numbers = #tpu.dot_dimension_numbers<[1], [0], [0], [1], [0, 0, 1, 1], [], []>} : vector<16x256xbf16>, vector<256x256xbf16>, vector<16x256xf32> -> vector<16x256xf32>
    %7 = arith.addf %3, %6 : vector<16x256xf32>
    %c0_6 = arith.constant 0 : index
    %c0_7 = arith.constant 0 : index
    %8 = vector.load %arg7[%c0_6, %c0_7] : memref<16x256xf32, #tpu.memory_space<vmem>>, vector<16x256xf32>
    tpu.vector_store %arg7[%c0_6, %c0_7], %7 {strides = array<i32>} : memref<16x256xf32, #tpu.memory_space<vmem>>, vector<16x256xf32>,
    %c0_i32_8 = arith.constant 0 : i32
    %9 = arith.cmpi eq, %arg2, %c0_i32_8 : i32
    %10 = arith.extui %9 : i1 to i32
    %c0_i32_9 = arith.constant 0 : i32
    %11 = arith.cmpi ne, %10, %c0_i32_9 : i32
    scf.if %11 {
      %c0_10 = arith.constant 0 : index
      %c0_11 = arith.constant 0 : index
      %12 = vector.load %arg7[%c0_10, %c0_11] : memref<16x256xf32, #tpu.memory_space<vmem>>, vector<16x256xf32>
      %c0_12 = arith.constant 0 : index
      %c0_13 = arith.constant 0 : index
      %13 = vector.load %arg6[%c0_12, %c0_13] : memref<16x256xf32, #tpu.memory_space<vmem>>, vector<16x256xf32>
      tpu.vector_store %arg6[%c0_12, %c0_13], %12 {strides = array<i32>} : memref<16x256xf32, #tpu.memory_space<vmem>>, vector<16x256xf32>,
    } else {
    }
    return
  }
  func.func @transform_0(%arg0: i32, %arg1: i32, %arg2: i32) -> (i32, i32) {
    %c0_i32 = arith.constant 0 : i32
    return %arg0, %arg2 : i32, i32
  }
  func.func @transform_1(%arg0: i32, %arg1: i32, %arg2: i32) -> (i32, i32) {
    %c0_i32 = arith.constant 0 : i32
    return %arg2, %arg1 : i32, i32
  }
  func.func @transform_2(%arg0: i32, %arg1: i32, %arg2: i32) -> (i32, i32) {
    %c0_i32 = arith.constant 0 : i32
    %c0_i32_0 = arith.constant 0 : i32
    return %c0_i32, %arg1 : i32, i32
  }
  func.func @transform_3(%arg0: i32, %arg1: i32, %arg2: i32) -> (i32, i32) {
    %c0_i32 = arith.constant 0 : i32
    return %arg0, %arg1 : i32, i32
  }
}

module attributes {stable_mosaic.version = 11 : i64} {
  func.func @_flash_attn_kernel(%arg0: i32, %arg1: i32, %arg2: i32, %arg3: i32, %arg4: memref<8x128xbf16, #tpu.memory_space<vmem>>, %arg5: memref<8x128xbf16, #tpu.memory_space<vmem>>, %arg6: memref<8x128xbf16, #tpu.memory_space<vmem>>, %arg7: memref<8x128xbf16, #tpu.memory_space<vmem>>, %arg8: memref<8x128xbf16, #tpu.memory_space<vmem>>, %arg9: memref<8x128xbf16, #tpu.memory_space<vmem>>, %arg10: memref<8x1xf32, #tpu.memory_space<vmem>>, %arg11: memref<8x1xf32, #tpu.memory_space<vmem>>, %arg12: memref<8x128xf32, #tpu.memory_space<vmem>>) attributes {dimension_semantics = [#tpu.dimension_semantics<parallel>, #tpu.dimension_semantics<parallel>, #tpu.dimension_semantics<parallel>, #tpu.dimension_semantics<arbitrary>], iteration_bounds = array<i64: 2, 2, 1, 1>, scalar_prefetch = 0 : i64, scratch_operands = 3 : i64, tpu.core_type = #tpu.core_type<tc>, window_params = [{transform_indices = @transform_0, window_bounds = array<i64: 8, 128>}, {transform_indices = @transform_1, window_bounds = array<i64: 8, 128>}, {transform_indices = @transform_2, window_bounds = array<i64: 8, 128>}, {transform_indices = @transform_3, window_bounds = array<i64: 8, 128>}, {transform_indices = @transform_4, window_bounds = array<i64: 8, 128>}, {transform_indices = @transform_5, window_bounds = array<i64: 8, 128>}]} {
    %c0_i32 = arith.constant 0 : i32
    %0 = arith.cmpi eq, %arg3, %c0_i32 : i32
    %1 = arith.extui %0 : i1 to i32
    %c0_i32_0 = arith.constant 0 : i32
    %2 = arith.cmpi ne, %1, %c0_i32_0 : i32
    scf.if %2 {
      %cst_28 = arith.constant 0xFF800000 : f32
      %37 = vector.broadcast %cst_28 : f32 to vector<8x1xf32>
      %c0_29 = arith.constant 0 : index
      %c0_30 = arith.constant 0 : index
      %38 = vector.load %arg10[%c0_29, %c0_30] : memref<8x1xf32, #tpu.memory_space<vmem>>, vector<8x1xf32>
      tpu.vector_store %arg10[%c0_29, %c0_30], %37 {strides = array<i32>} : memref<8x1xf32, #tpu.memory_space<vmem>>, vector<8x1xf32>,
      %cst_31 = arith.constant 0.000000e+00 : f32
      %39 = vector.broadcast %cst_31 : f32 to vector<8x1xf32>
      %c0_32 = arith.constant 0 : index
      %c0_33 = arith.constant 0 : index
      %40 = vector.load %arg11[%c0_32, %c0_33] : memref<8x1xf32, #tpu.memory_space<vmem>>, vector<8x1xf32>
      tpu.vector_store %arg11[%c0_32, %c0_33], %39 {strides = array<i32>} : memref<8x1xf32, #tpu.memory_space<vmem>>, vector<8x1xf32>,
      %cst_34 = arith.constant 0.000000e+00 : f32
      %41 = vector.broadcast %cst_34 : f32 to vector<8x128xf32>
      %c0_35 = arith.constant 0 : index
      %c0_36 = arith.constant 0 : index
      %42 = vector.load %arg12[%c0_35, %c0_36] : memref<8x128xf32, #tpu.memory_space<vmem>>, vector<8x128xf32>
      tpu.vector_store %arg12[%c0_35, %c0_36], %41 {strides = array<i32>} : memref<8x128xf32, #tpu.memory_space<vmem>>, vector<8x128xf32>,
    } else {
    }
    %c0 = arith.constant 0 : index
    %c0_1 = arith.constant 0 : index
    %3 = vector.load %arg4[%c0, %c0_1] : memref<8x128xbf16, #tpu.memory_space<vmem>>, vector<8x128xbf16>
    %c0_2 = arith.constant 0 : index
    %c0_3 = arith.constant 0 : index
    %4 = vector.load %arg6[%c0_2, %c0_3] : memref<8x128xbf16, #tpu.memory_space<vmem>>, vector<8x128xbf16>
    %cst = arith.constant dense<0.000000e+00> : vector<8x8xf32>
    %5 = tpu.matmul %3, %4, %cst {dimension_numbers = #tpu.dot_dimension_numbers<[1], [1], [0], [0], [0, 0, 1, 0], [], []>} : vector<8x128xbf16>, vector<8x128xbf16>, vector<8x8xf32> -> vector<8x8xf32>
    %c0_4 = arith.constant 0 : index
    %c0_5 = arith.constant 0 : index
    %6 = vector.load %arg5[%c0_4, %c0_5] : memref<8x128xbf16, #tpu.memory_space<vmem>>, vector<8x128xbf16>
    %c0_6 = arith.constant 0 : index
    %c0_7 = arith.constant 0 : index
    %7 = vector.load %arg7[%c0_6, %c0_7] : memref<8x128xbf16, #tpu.memory_space<vmem>>, vector<8x128xbf16>
    %cst_8 = arith.constant dense<0.000000e+00> : vector<8x8xf32>
    %8 = tpu.matmul %6, %7, %cst_8 {dimension_numbers = #tpu.dot_dimension_numbers<[1], [1], [0], [0], [0, 0, 1, 0], [], []>} : vector<8x128xbf16>, vector<8x128xbf16>, vector<8x8xf32> -> vector<8x8xf32>
    %9 = arith.addf %5, %8 : vector<8x8xf32>
    %c0_9 = arith.constant 0 : index
    %c0_10 = arith.constant 0 : index
    %10 = vector.load %arg10[%c0_9, %c0_10] : memref<8x1xf32, #tpu.memory_space<vmem>>, vector<8x1xf32>
    %cst_11 = arith.constant dense<0xFF800000> : vector<8xf32>
    %11 = vector.multi_reduction <maximumf>, %9, %cst_11 [1] : vector<8x8xf32> to vector<8xf32>
    %12 = vector.shape_cast %11 : vector<8xf32> to vector<8x1xf32>
    %13 = arith.maximumf %10, %12 : vector<8x1xf32>
    %14 = arith.subf %10, %13 : vector<8x1xf32>
    %15 = math.exp %14 : vector<8x1xf32>
    %16 = vector.broadcast %13 : vector<8x1xf32> to vector<8x8xf32>
    %17 = arith.subf %9, %16 : vector<8x8xf32>
    %18 = math.exp %17 : vector<8x8xf32>
    %c0_12 = arith.constant 0 : index
    %c0_13 = arith.constant 0 : index
    %19 = vector.load %arg11[%c0_12, %c0_13] : memref<8x1xf32, #tpu.memory_space<vmem>>, vector<8x1xf32>
    %20 = arith.mulf %15, %19 : vector<8x1xf32>
    %cst_14 = arith.constant dense<0.000000e+00> : vector<8xf32>
    %21 = vector.multi_reduction <add>, %18, %cst_14 [1] : vector<8x8xf32> to vector<8xf32>
    %22 = vector.shape_cast %21 : vector<8xf32> to vector<8x1xf32>
    %23 = arith.addf %20, %22 : vector<8x1xf32>
    %c0_15 = arith.constant 0 : index
    %c0_16 = arith.constant 0 : index
    %24 = vector.load %arg11[%c0_15, %c0_16] : memref<8x1xf32, #tpu.memory_space<vmem>>, vector<8x1xf32>
    tpu.vector_store %arg11[%c0_15, %c0_16], %23 {strides = array<i32>} : memref<8x1xf32, #tpu.memory_space<vmem>>, vector<8x1xf32>,
    %c0_17 = arith.constant 0 : index
    %c0_18 = arith.constant 0 : index
    %25 = vector.load %arg12[%c0_17, %c0_18] : memref<8x128xf32, #tpu.memory_space<vmem>>, vector<8x128xf32>
    %26 = vector.broadcast %15 : vector<8x1xf32> to vector<8x128xf32>
    %27 = arith.mulf %26, %25 : vector<8x128xf32>
    %28 = arith.truncf %18 : vector<8x8xf32> to vector<8x8xbf16>
    %c0_19 = arith.constant 0 : index
    %c0_20 = arith.constant 0 : index
    %29 = vector.load %arg8[%c0_19, %c0_20] : memref<8x128xbf16, #tpu.memory_space<vmem>>, vector<8x128xbf16>
    %cst_21 = arith.constant dense<0.000000e+00> : vector<8x128xf32>
    %30 = tpu.matmul %28, %29, %cst_21 {dimension_numbers = #tpu.dot_dimension_numbers<[1], [0], [0], [1], [0, 0, 1, 1], [], []>} : vector<8x8xbf16>, vector<8x128xbf16>, vector<8x128xf32> -> vector<8x128xf32>
    %31 = arith.addf %27, %30 : vector<8x128xf32>
    %c0_22 = arith.constant 0 : index
    %c0_23 = arith.constant 0 : index
    %32 = vector.load %arg12[%c0_22, %c0_23] : memref<8x128xf32, #tpu.memory_space<vmem>>, vector<8x128xf32>
    tpu.vector_store %arg12[%c0_22, %c0_23], %31 {strides = array<i32>} : memref<8x128xf32, #tpu.memory_space<vmem>>, vector<8x128xf32>,
    %c0_24 = arith.constant 0 : index
    %c0_25 = arith.constant 0 : index
    %33 = vector.load %arg10[%c0_24, %c0_25] : memref<8x1xf32, #tpu.memory_space<vmem>>, vector<8x1xf32>
    tpu.vector_store %arg10[%c0_24, %c0_25], %13 {strides = array<i32>} : memref<8x1xf32, #tpu.memory_space<vmem>>, vector<8x1xf32>,
    %c0_i32_26 = arith.constant 0 : i32
    %34 = arith.cmpi eq, %arg3, %c0_i32_26 : i32
    %35 = arith.extui %34 : i1 to i32
    %c0_i32_27 = arith.constant 0 : i32
    %36 = arith.cmpi ne, %35, %c0_i32_27 : i32
    scf.if %36 {
      %c0_28 = arith.constant 0 : index
      %c0_29 = arith.constant 0 : index
      %37 = vector.load %arg11[%c0_28, %c0_29] : memref<8x1xf32, #tpu.memory_space<vmem>>, vector<8x1xf32>
      %38 = tpu.reciprocal %37 {approx = true} : vector<8x1xf32> -> vector<8x1xf32>
      %c0_30 = arith.constant 0 : index
      %c0_31 = arith.constant 0 : index
      %39 = vector.load %arg12[%c0_30, %c0_31] : memref<8x128xf32, #tpu.memory_space<vmem>>, vector<8x128xf32>
      %40 = vector.broadcast %38 : vector<8x1xf32> to vector<8x128xf32>
      %41 = arith.mulf %39, %40 : vector<8x128xf32>
      %42 = arith.truncf %41 : vector<8x128xf32> to vector<8x128xbf16>
      %c0_32 = arith.constant 0 : index
      %c0_33 = arith.constant 0 : index
      %43 = vector.load %arg9[%c0_32, %c0_33] : memref<8x128xbf16, #tpu.memory_space<vmem>>, vector<8x128xbf16>
      tpu.vector_store %arg9[%c0_32, %c0_33], %42 {strides = array<i32>} : memref<8x128xbf16, #tpu.memory_space<vmem>>, vector<8x128xbf16>,
    } else {
    }
    return
  }
  func.func @transform_0(%arg0: i32, %arg1: i32, %arg2: i32, %arg3: i32) -> (i32, i32) {
    %c1_i32 = arith.constant 1 : i32
    %0 = arith.muli %arg0, %c1_i32 : i32
    %1 = arith.addi %0, %arg2 : i32
    %c0_i32 = arith.constant 0 : i32
    return %1, %arg1 : i32, i32
  }
  func.func @transform_1(%arg0: i32, %arg1: i32, %arg2: i32, %arg3: i32) -> (i32, i32) {
    %c1_i32 = arith.constant 1 : i32
    %0 = arith.muli %arg0, %c1_i32 : i32
    %1 = arith.addi %0, %arg2 : i32
    %c0_i32 = arith.constant 0 : i32
    return %1, %arg1 : i32, i32
  }
  func.func @transform_2(%arg0: i32, %arg1: i32, %arg2: i32, %arg3: i32) -> (i32, i32) {
    %c1_i32 = arith.constant 1 : i32
    %0 = arith.muli %arg0, %c1_i32 : i32
    %1 = arith.addi %0, %arg3 : i32
    %c0_i32 = arith.constant 0 : i32
    return %1, %arg1 : i32, i32
  }
  func.func @transform_3(%arg0: i32, %arg1: i32, %arg2: i32, %arg3: i32) -> (i32, i32) {
    %c1_i32 = arith.constant 1 : i32
    %0 = arith.muli %arg0, %c1_i32 : i32
    %1 = arith.addi %0, %arg3 : i32
    %c0_i32 = arith.constant 0 : i32
    %c0_i32_0 = arith.constant 0 : i32
    return %1, %c0_i32 : i32, i32
  }
  func.func @transform_4(%arg0: i32, %arg1: i32, %arg2: i32, %arg3: i32) -> (i32, i32) {
    %c1_i32 = arith.constant 1 : i32
    %0 = arith.muli %arg0, %c1_i32 : i32
    %1 = arith.addi %0, %arg3 : i32
    %c2_i32 = arith.constant 2 : i32
    %2 = arith.addi %c2_i32, %arg1 : i32
    %c0_i32 = arith.constant 0 : i32
    return %1, %2 : i32, i32
  }
  func.func @transform_5(%arg0: i32, %arg1: i32, %arg2: i32, %arg3: i32) -> (i32, i32) {
    %c1_i32 = arith.constant 1 : i32
    %0 = arith.muli %arg0, %c1_i32 : i32
    %1 = arith.addi %0, %arg2 : i32
    %c0_i32 = arith.constant 0 : i32
    return %1, %arg1 : i32, i32
  }
}

</mosaic_0001>

<llo_original>
// kernel: mla_forward.5
$region0: #{mla_forward.5}
  #allocation0 [shape = 'u32[]', space=smem, size = 0x4, offset = 0x4, fixed_abs, tag = 'smem constant byte address 0x4 - core index']
  #allocation1 [shape = 'u32[144,128]{1,0:T(1,128)}', space=vmem, size = 0x12000, scoped, tag = 'internal scratch']
  #allocation2 [shape = 'f32[16,128]{1,0:T(8,128)}', space=vmem, size = 0x2000, scoped, tag = 'scratch operand']
  %s0 = inlined_call_operand.vmem [shape: bf16[16,256], index: 0, kind: input, shape index: {}]
  %s1 = inlined_call_operand.hbm [shape: bf16[256,384], index: 1, kind: input, shape index: {}]
  %s2 = inlined_call_operand.vmem [shape: f32[1,384], index: 2, kind: input, shape index: {}]
  %s3 = inlined_call_operand.vmem [shape: bf16[16,384], index: 3, kind: output, shape index: {}]
  %s4 = sld [smem:[#allocation0]]
  $region94: #{mla_forward.5} parent=0
    _
  %s6 = ssub.s32 1, %s4
  %s7 = scalar_select 0, %s6, %s4
  $region1: #{mla_forward.5} parent=0
    #allocation3 [shape = 'u8[131072]{0}', space=vmem, size = 0x20000, scoped, tag = 'input window, operand 1']
    #allocation4 [shape = 's32[2]{0}', space=sflag, size = 0x8, scoped, tag = 'scoped memory for mla_forward.5']
    #allocation5 [shape = 'u8[8192]{0}', space=vmem, size = 0x2000, scoped, tag = 'output window, operand 0']
    %8 = vsyncpa [#allocation4], 0
    %s9 = scalar_lea.sflag [#allocation4], 1
    %10 = vsyncpa %s9, 0
    loop: start=0, step=1, limit=5
    $region2: #{mla_forward.5} parent=1 // loop_pre_header
      _
    $region3: #{mla_forward.5} parent=1 // loop_header
      %s12 = sphi 0, %s16
      %p13 = scmp.ge.s32.totalorder %s12, 5
      %s19 = sphi 0, %s38
      %s20 = sphi 0, %s34
      %s21 = sphi 0, %s30
      %s22 = sphi 0, %s19
      %s23 = sphi 0, %s20
      %s24 = sphi 0, %s21
      %s25 = sphi 0, %s22
      %s26 = sphi 0, %s23
      %s27 = sphi 0, %s24
      %s43 = sphi 0, %s45
      %s46 = sphi 0, %s43
      %s47 = sphi 0, %s46
      %s63 = sphi 0, %s47
      %s71 = sphi 0, %s73
      %s74 = sphi 0, %s71
      %s75 = sphi 0, %s74
      %s91 = sphi 0, %s75
      %s97 = sphi 0, %s99
      %s100 = sphi 0, %s97
      %s101 = sphi 0, %s100
      %s117 = sphi 0, %s101
      %s125 = sphi 0, %s127
      %s128 = sphi 0, %s125
      %s129 = sphi 0, %s128
      %s145 = sphi 0, %s129
    $region4: #{mla_forward.5} parent=1 // loop_header_branch
      %15 = sbr.rel (%p13) target = $region8
    $region5: #{mla_forward.5} parent=1 // loop_body
      %s17 = ssub.s32 %s12, 1
      %s18 = ssub.s32 %s12, 2
      %s28 = sadd.s32 1, %s21
      %p29 = scmp.ge.s32.totalorder %s28, 1
      %s30 = scalar_select %p29, 0, %s28
      %s31 = sadd.s32 1, %s20
      %s32 = scalar_select %p29, %s31, %s20
      %p33 = scmp.ge.s32.totalorder %s32, 3
      %s34 = scalar_select %p33, 0, %s32
      %s35 = sadd.s32 1, %s19
      %s36 = scalar_select %p33, %s35, %s19
      %p37 = scmp.ge.s32.totalorder %s36, 1
      %s38 = scalar_select %p37, 0, %s36
      %s39 = ssub.s32 %s19, %s38
      %s40 = ssub.s32 %s21, %s30
      %s41 = sor.u32 %s39, %s40
      %p42 = scmp.eq.s32.totalorder %s41, 0
      %s44 = sadd.s32 %s43, 1
      %s45 = scalar_select %p42, %s43, %s44
      %p48 = pneg %p42
      %p49 = scmp.eq.s32.totalorder %s12, 2
      %p50 = por %p48, %p49
      %p51 = scmp.ne.s32.totalorder %s43, %s46
      %p52 = scmp.eq.s32.totalorder %s12, 0
      %p53 = por %p51, %p52
      %p54 = scmp.ne.s32.totalorder %s43, %s46
      %p55 = scmp.eq.s32.totalorder %s17, 2
      %p56 = por %p54, %p55
      %p57 = scmp.ne.s32.totalorder %s46, %s47
      %p58 = scmp.eq.s32.totalorder %s17, 0
      %p59 = por %p57, %p58
      %p60 = scmp.ne.s32.totalorder %s46, %s47
      %p61 = scmp.eq.s32.totalorder %s18, 2
      %p62 = por %p60, %p61
      %p64 = scmp.ne.s32.totalorder %s47, %s63
      %p65 = scmp.eq.s32.totalorder %s18, 0
      %p66 = por %p64, %p65
      %s67 = ssub.s32 %s21, %s30
      %s68 = ssub.s32 %s20, %s34
      %s69 = sor.u32 %s67, %s68
      %p70 = scmp.eq.s32.totalorder %s69, 0
      %s72 = sadd.s32 %s71, 1
      %s73 = scalar_select %p70, %s71, %s72
      %p76 = pneg %p70
      %p77 = scmp.eq.s32.totalorder %s12, 2
      %p78 = por %p76, %p77
      %p79 = scmp.ne.s32.totalorder %s71, %s74
      %p80 = scmp.eq.s32.totalorder %s12, 0
      %p81 = por %p79, %p80
      %p82 = scmp.ne.s32.totalorder %s71, %s74
      %p83 = scmp.eq.s32.totalorder %s17, 2
      %p84 = por %p82, %p83
      %p85 = scmp.ne.s32.totalorder %s74, %s75
      %p86 = scmp.eq.s32.totalorder %s17, 0
      %p87 = por %p85, %p86
      %p88 = scmp.ne.s32.totalorder %s74, %s75
      %p89 = scmp.eq.s32.totalorder %s18, 2
      %p90 = por %p88, %p89
      %p92 = scmp.ne.s32.totalorder %s75, %s91
      %p93 = scmp.eq.s32.totalorder %s18, 0
      %p94 = por %p92, %p93
      %s95 = ssub.s32 %s20, %s34
      %p96 = scmp.eq.s32.totalorder %s95, 0
      %s98 = sadd.s32 %s97, 1
      %s99 = scalar_select %p96, %s97, %s98
      %p102 = pneg %p96
      %p103 = scmp.eq.s32.totalorder %s12, 2
      %p104 = por %p102, %p103
      %p105 = scmp.ne.s32.totalorder %s97, %s100
      %p106 = scmp.eq.s32.totalorder %s12, 0
      %p107 = por %p105, %p106
      %p108 = scmp.ne.s32.totalorder %s97, %s100
      %p109 = scmp.eq.s32.totalorder %s17, 2
      %p110 = por %p108, %p109
      %p111 = scmp.ne.s32.totalorder %s100, %s101
      %p112 = scmp.eq.s32.totalorder %s17, 0
      %p113 = por %p111, %p112
      %p114 = scmp.ne.s32.totalorder %s100, %s101
      %p115 = scmp.eq.s32.totalorder %s18, 2
      %p116 = por %p114, %p115
      %p118 = scmp.ne.s32.totalorder %s101, %s117
      %p119 = scmp.eq.s32.totalorder %s18, 0
      %p120 = por %p118, %p119
      %s121 = ssub.s32 %s19, %s38
      %s122 = ssub.s32 %s20, %s34
      %s123 = sor.u32 %s121, %s122
      %p124 = scmp.eq.s32.totalorder %s123, 0
      %s126 = sadd.s32 %s125, 1
      %s127 = scalar_select %p124, %s125, %s126
      %p130 = pneg %p124
      %p131 = scmp.eq.s32.totalorder %s12, 2
      %p132 = por %p130, %p131
      %p133 = scmp.ne.s32.totalorder %s125, %s128
      %p134 = scmp.eq.s32.totalorder %s12, 0
      %p135 = por %p133, %p134
      %p136 = scmp.ne.s32.totalorder %s125, %s128
      %p137 = scmp.eq.s32.totalorder %s17, 2
      %p138 = por %p136, %p137
      %p139 = scmp.ne.s32.totalorder %s128, %s129
      %p140 = scmp.eq.s32.totalorder %s17, 0
      %p141 = por %p139, %p140
      %p142 = scmp.ne.s32.totalorder %s128, %s129
      %p143 = scmp.eq.s32.totalorder %s18, 2
      %p144 = por %p142, %p143
      %p146 = scmp.ne.s32.totalorder %s129, %s145
      %p147 = scmp.eq.s32.totalorder %s18, 0
      %p148 = por %p146, %p147
      %p149 = scmp.le.s32.totalorder 1, %s12
      %p150 = scmp.lt.s32.totalorder %s12, 4
      %p151 = pnand %p149, %p150
      %p152 = pneg %p151
      // Predicated region
      $region9: #{mla_forward.5} parent=5 // pred_check
        _
      $region10: #{mla_forward.5} parent=5 // pred_check_branch
        %154 = sbr.rel (%p151) target = $region12
      $region11: #{mla_forward.5} parent=5 // pred_region
        %s155 = ssub.s32 %s12, 1
        // Predicated region
        $region13: #{mla_forward.5} parent=11 // pred_check
          %p156 = pneg %p59
        $region14: #{mla_forward.5} parent=11 // pred_check_branch
          %158 = sbr.rel (%p156) target = $region16
        $region15: #{mla_forward.5} parent=11 // pred_region
          %s159 = smul.u32 2, %s22
          %s160 = smul.u32 2, %s24
          %p161 = scmp.lt.s32.totalorder %s159, 1
          %s162 = scalar_select %p161, %s159, 1
          %p163 = scmp.lt.s32.totalorder %s160, 1
          %s164 = scalar_select %p163, %s160, 1
          %s165 = smul.addr %s162, 2
          %s166 = sadd.s32 %s164, %s165
          %s167 = smul.addr %s166, 4
          %s168 = scalar_lea.vmem %s0, %s167
          %s169 = smul.u32 2, %s22
          %s170 = smul.u32 2, %s24
        $region16: #{mla_forward.5} parent=11 // pred_fallthru
          _
      $region12: #{mla_forward.5} parent=5 // pred_fallthru
        _
      %p171 = scmp.lt.s32.totalorder %s12, 3
      // Predicated region
      $region17: #{mla_forward.5} parent=5 // pred_check
        %p172 = pneg %p171
      $region18: #{mla_forward.5} parent=5 // pred_check_branch
        %174 = sbr.rel (%p172) target = $region20
      $region19: #{mla_forward.5} parent=5 // pred_region
        // Predicated region
        $region21: #{mla_forward.5} parent=19 // pred_check
          %p175 = pneg %p81
        $region22: #{mla_forward.5} parent=19 // pred_check_branch
          %177 = sbr.rel (%p175) target = $region24
        $region23: #{mla_forward.5} parent=19 // pred_region
          %s178 = sand.u32 %s71, 1
          %s179 = scalar_lea.sflag [#allocation4], %s178
          %s180 = sand.u32 %s71, 1
          %s181 = smul.addr %s180, 128
          %s182 = scalar_lea.vmem [#allocation3], %s181
          %s183 = smul.u32 32, %s21
          %s185 = ssub.s32 2048, 2048
          %186 = vsyncadd %s179, %s185
          %s187 = smul.addr %s183, 3
          %s188 = sadd.s32 %s20, %s187
          %s189 = smul.addr %s188, 64
          %s190 = scalar_lea.hbm %s1, %s189
          %s191 = sshll.u32 %s182, 4
          %s192 = int_to_ptr.vmem [resolvable:$true] %s191
          %197 = dma.hbm_to_vmem [thread:$0]  %s190, 2048, %s192, %s179, 192, 64, 4
        $region24: #{mla_forward.5} parent=19 // pred_fallthru
          _
        // Predicated region
        $region25: #{mla_forward.5} parent=19 // pred_check
          %p198 = pneg %p107
        $region26: #{mla_forward.5} parent=19 // pred_check_branch
          %200 = sbr.rel (%p198) target = $region28
        $region27: #{mla_forward.5} parent=19 // pred_region
          %p201 = scmp.lt.s32.totalorder %s20, 2
          %s202 = scalar_select %p201, %s20, 2
          %s203 = scalar_lea.vmem %s2, %s202
        $region28: #{mla_forward.5} parent=19 // pred_fallthru
          _
      $region20: #{mla_forward.5} parent=5 // pred_fallthru
        _
      %p204 = scmp.le.s32.totalorder 1, %s12
      %p205 = scmp.lt.s32.totalorder %s12, 4
      %p206 = pnand %p204, %p205
      %p207 = pneg %p206
      // Predicated region
      $region29: #{mla_forward.5} parent=5 // pred_check
        _
      $region30: #{mla_forward.5} parent=5 // pred_check_branch
        %209 = sbr.rel (%p206) target = $region32
      $region31: #{mla_forward.5} parent=5 // pred_region
        %s210 = ssub.s32 %s12, 1
        %s211 = sand.u32 %s74, 1
        %s212 = scalar_lea.sflag [#allocation4], %s211
        %s213 = sand.u32 %s74, 1
        %s214 = smul.addr %s213, 128
        %s215 = scalar_lea.vmem [#allocation3], %s214
        // Predicated region
        $region33: #{mla_forward.5} parent=31 // pred_check
          %p216 = pneg %p87
        $region34: #{mla_forward.5} parent=31 // pred_check_branch
          %218 = sbr.rel (%p216) target = $region36
        $region35: #{mla_forward.5} parent=31 // pred_region
          %219 = dma.done %s212, 2048
        $region36: #{mla_forward.5} parent=31 // pred_fallthru
          _
        %s220 = smul.u32 2, %s22
        %s221 = smul.u32 2, %s24
        %p222 = scmp.lt.s32.totalorder %s220, 1
        %s223 = scalar_select %p222, %s220, 1
        %p224 = scmp.lt.s32.totalorder %s221, 1
        %s225 = scalar_select %p224, %s221, 1
        %s226 = smul.addr %s223, 2
        %s227 = sadd.s32 %s225, %s226
        %s228 = smul.addr %s227, 4
        %s229 = scalar_lea.vmem %s0, %s228
        %p230 = pneg %p59
        %p231 = pneg %p56
        %s232 = sand.u32 %s74, 1
        %s233 = scalar_lea.sflag [#allocation4], %s232
        %s234 = sand.u32 %s74, 1
        %s235 = smul.addr %s234, 128
        %s236 = scalar_lea.vmem [#allocation3], %s235
        %p237 = pneg %p87
        %p238 = pneg %p84
        %p239 = scmp.lt.s32.totalorder %s23, 2
        %s240 = scalar_select %p239, %s23, 2
        %s241 = scalar_lea.vmem %s2, %s240
        %p242 = pneg %p113
        %p243 = pneg %p110
        %p244 = pneg %p141
        %p245 = pneg %p138
        %s246 = sand.u32 %s128, 1
        %s247 = sand.u32 %s128, 1
        %s248 = smul.addr %s247, 8
        %s249 = scalar_lea.vmem [#allocation5], %s248
        %s250 = smul.u32 2, %s22
        %s251 = smul.u32 2, %s24
        %p252 = scmp.lt.s32.totalorder %s250, 1
        %s253 = scalar_select %p252, %s250, 1
        %p254 = scmp.lt.s32.totalorder %s251, 1
        %s255 = scalar_select %p254, %s251, 1
        %s256 = smul.addr %s253, 2
        %s257 = sadd.s32 %s255, %s256
        %s258 = smul.addr %s257, 4
        %s259 = scalar_lea.vmem %s0, %s258
        %s260 = smul.u32 2, %s22
        %s261 = smul.u32 2, %s24
        %s262 = smul.u32 32, %s24
        %p263 = scmp.lt.s32.totalorder %s23, 2
        %s264 = scalar_select %p263, %s23, 2
        %s265 = scalar_lea.vmem %s2, %s264
        %s266 = smul.u32 2, %s22
        %p268 = scmp.eq.s32.totalorder %s24, 0
        // Predicated region
        $region37: #{mla_forward.5} parent=31 // pred_check
          %p269 = pneg %p268
        $region38: #{mla_forward.5} parent=31 // pred_check_branch
          %271 = sbr.rel (%p269) target = $region40
        $region39: #{mla_forward.5} parent=31 // pred_region
          %v272 = vld [vmem:[%s265] sm:$0x1]
          %v274 = vlaneseq
          %v275 = vshrl.u32 %v274, 7
          %v276 = vsub.s32 0, %v275
          %v277 = vrot.slane %v272, %v276
          %279 = vst [vmem:[#allocation2] sm:$0xff] %v277
          %280 = vst [vmem:[#allocation2 + $0x8] sm:$0xff] %v277
        $region40: #{mla_forward.5} parent=31 // pred_fallthru
          _
        %v281 = vld [vmem:[#allocation2] sm:$0xff]
        %v282 = vld [vmem:[#allocation2 + $0x8] sm:$0xff]
        %v283 = vld [vmem:[%s259] sm:$0xff]
        %v284 = vld [vmem:[%s259 + $0x8] sm:$0xff]
        %v285 = vld [vmem:[%s215] sm:$0xf]
        %v286 = vld [vmem:[%s215 + $0x4] sm:$0xf]
        %v287 = vld [vmem:[%s215 + $0x8] sm:$0xf]
        %v288 = vld [vmem:[%s215 + $0xc] sm:$0xf]
        %v289 = vld [vmem:[%s215 + $0x10] sm:$0xf]
        %v290 = vld [vmem:[%s215 + $0x14] sm:$0xf]
        %v291 = vld [vmem:[%s215 + $0x18] sm:$0xf]
        %v292 = vld [vmem:[%s215 + $0x1c] sm:$0xf]
        %v293 = vld [vmem:[%s215 + $0x20] sm:$0xf]
        %v294 = vld [vmem:[%s215 + $0x24] sm:$0xf]
        %v295 = vld [vmem:[%s215 + $0x28] sm:$0xf]
        %v296 = vld [vmem:[%s215 + $0x2c] sm:$0xf]
        %v297 = vld [vmem:[%s215 + $0x30] sm:$0xf]
        %v298 = vld [vmem:[%s215 + $0x34] sm:$0xf]
        %v299 = vld [vmem:[%s215 + $0x38] sm:$0xf]
        %v300 = vld [vmem:[%s215 + $0x3c] sm:$0xf]
        %v301 = vld [vmem:[%s215 + $0x40] sm:$0xf]
        %v302 = vld [vmem:[%s215 + $0x44] sm:$0xf]
        %v303 = vld [vmem:[%s215 + $0x48] sm:$0xf]
        %v304 = vld [vmem:[%s215 + $0x4c] sm:$0xf]
        %v305 = vld [vmem:[%s215 + $0x50] sm:$0xf]
        %v306 = vld [vmem:[%s215 + $0x54] sm:$0xf]
        %v307 = vld [vmem:[%s215 + $0x58] sm:$0xf]
        %v308 = vld [vmem:[%s215 + $0x5c] sm:$0xf]
        %v309 = vld [vmem:[%s215 + $0x60] sm:$0xf]
        %v310 = vld [vmem:[%s215 + $0x64] sm:$0xf]
        %v311 = vld [vmem:[%s215 + $0x68] sm:$0xf]
        %v312 = vld [vmem:[%s215 + $0x6c] sm:$0xf]
        %v313 = vld [vmem:[%s215 + $0x70] sm:$0xf]
        %v314 = vld [vmem:[%s215 + $0x74] sm:$0xf]
        %v315 = vld [vmem:[%s215 + $0x78] sm:$0xf]
        %v316 = vld [vmem:[%s215 + $0x7c] sm:$0xf]
        %v319 = vunpack.c.l.b16 %v283
        %v320 = vunpack.c.h.b16 %v283
        %v321 = vunpack.c.l.b16 %v284
        %v322 = vunpack.c.h.b16 %v284
        %v323 = vpack.c.b16 %v321, %v319
        %v324 = vpack.c.b16 %v322, %v320
        %v359 = vunpack.c.l.b16 %v285
        %v360 = vunpack.c.l.b16 %v286
        %v361 = vunpack.c.l.b16 %v287
        %v362 = vunpack.c.l.b16 %v288
        %v363 = vunpack.c.l.b16 %v289
        %v364 = vunpack.c.l.b16 %v290
        %v365 = vunpack.c.l.b16 %v291
        %v366 = vunpack.c.l.b16 %v292
        %v367 = vunpack.c.l.b16 %v293
        %v368 = vunpack.c.l.b16 %v294
        %v369 = vunpack.c.l.b16 %v295
        %v370 = vunpack.c.l.b16 %v296
        %v371 = vunpack.c.l.b16 %v297
        %v372 = vunpack.c.l.b16 %v298
        %v373 = vunpack.c.l.b16 %v299
        %v374 = vunpack.c.l.b16 %v300
        %v375 = vunpack.c.l.b16 %v301
        %v376 = vunpack.c.l.b16 %v302
        %v377 = vunpack.c.l.b16 %v303
        %v378 = vunpack.c.l.b16 %v304
        %v379 = vunpack.c.l.b16 %v305
        %v380 = vunpack.c.l.b16 %v306
        %v381 = vunpack.c.l.b16 %v307
        %v382 = vunpack.c.l.b16 %v308
        %v383 = vunpack.c.l.b16 %v309
        %v384 = vunpack.c.l.b16 %v310
        %v385 = vunpack.c.l.b16 %v311
        %v386 = vunpack.c.l.b16 %v312
        %v387 = vunpack.c.l.b16 %v313
        %v388 = vunpack.c.l.b16 %v314
        %v389 = vunpack.c.l.b16 %v315
        %v390 = vunpack.c.l.b16 %v316
        %v391 = vpack.c.b16 %v360, %v359
        %v392 = vpack.c.b16 %v362, %v361
        %v393 = vpack.c.b16 %v364, %v363
        %v394 = vpack.c.b16 %v366, %v365
        %v395 = vpack.c.b16 %v368, %v367
        %v396 = vpack.c.b16 %v370, %v369
        %v397 = vpack.c.b16 %v372, %v371
        %v398 = vpack.c.b16 %v374, %v373
        %v399 = vpack.c.b16 %v376, %v375
        %v400 = vpack.c.b16 %v378, %v377
        %v401 = vpack.c.b16 %v380, %v379
        %v402 = vpack.c.b16 %v382, %v381
        %v403 = vpack.c.b16 %v384, %v383
        %v404 = vpack.c.b16 %v386, %v385
        %v405 = vpack.c.b16 %v388, %v387
        %v406 = vpack.c.b16 %v390, %v389
        %423 = vmatprep.subr.bf16.mxu0 0
        %424 = vmatpush1.bf16.msra.mxu0 %v391
        %425 = vmatprep.subr.bf16.mxu0 0
        %426 = vmatpush1.bf16.msra.mxu0 %v392
        %427 = vmatprep.subr.bf16.mxu0 0
        %428 = vmatpush1.bf16.msra.mxu0 %v393
        %429 = vmatprep.subr.bf16.mxu0 0
        %430 = vmatpush1.bf16.msra.mxu0 %v394
        %431 = vmatprep.subr.bf16.mxu0 0
        %432 = vmatpush1.bf16.msra.mxu0 %v395
        %433 = vmatprep.subr.bf16.mxu0 0
        %434 = vmatpush1.bf16.msra.mxu0 %v396
        %435 = vmatprep.subr.bf16.mxu0 0
        %436 = vmatpush1.bf16.msra.mxu0 %v397
        %437 = vmatprep.subr.bf16.mxu0 0
        %438 = vmatpush1.bf16.msra.mxu0 %v398
        %439 = vmatprep.subr.bf16.mxu0 0
        %440 = vmatpush1.bf16.msra.mxu0 %v399
        %441 = vmatprep.subr.bf16.mxu0 0
        %442 = vmatpush1.bf16.msra.mxu0 %v400
        %443 = vmatprep.subr.bf16.mxu0 0
        %444 = vmatpush1.bf16.msra.mxu0 %v401
        %445 = vmatprep.subr.bf16.mxu0 0
        %446 = vmatpush1.bf16.msra.mxu0 %v402
        %447 = vmatprep.subr.bf16.mxu0 0
        %448 = vmatpush1.bf16.msra.mxu0 %v403
        %449 = vmatprep.subr.bf16.mxu0 0
        %450 = vmatpush1.bf16.msra.mxu0 %v404
        %451 = vmatprep.subr.bf16.mxu0 0
        %452 = vmatpush1.bf16.msra.mxu0 %v405
        %453 = vmatprep.subr.bf16.mxu0 0
        %454 = vmatpush1.bf16.msra.mxu0 %v406
        %455 = vmatprep.mubr.bf16.mxu0 %v324
        %456 = vmatmul.mubr.bf16.gmra.mrb[0].mxu0 %v323
        %v457 = vpop.f32.mrb[0].mxu0
        %v458 = vadd.f32 0.0, %v457
        %v459 = vpop.f32.mrb[0].mxu0
        %v460 = vpop.f32.mrb[0].mxu0
        %v461 = vadd.f32 0.0, %v460
        %v462 = vpop.f32.mrb[0].mxu0
        %463 = vdwg.mxu0
        %v464 = vadd.f32 %v281, %v458
        %v465 = vadd.f32 %v282, %v461
        %466 = vst [vmem:[#allocation2] sm:$0xff] %v464
        %467 = vst [vmem:[#allocation2 + $0x8] sm:$0xff] %v465
        // Predicated region
        $region41: #{mla_forward.5} parent=31 // pred_check
          %p468 = pneg %p268
        $region42: #{mla_forward.5} parent=31 // pred_check_branch
          %470 = sbr.rel (%p468) target = $region44
        $region43: #{mla_forward.5} parent=31 // pred_region
          %v471 = vld [vmem:[#allocation2] sm:$0xff]
          %v472 = vld [vmem:[#allocation2 + $0x8] sm:$0xff]
          %v473 = vpack.c.bf16 %v472, %v471
          %v475 = vunpack.c.l.b16 %v473
          %v476 = vunpack.c.h.b16 %v473
          %v477 = vpack.c.b16 %v475, %v475
          %v478 = vpack.c.b16 %v476, %v476
          %481 = vst [vmem:[%s249] sm:$0xf] %v477
          %482 = vst [vmem:[%s249 + $0x4] sm:$0xf] %v478
        $region44: #{mla_forward.5} parent=31 // pred_fallthru
          _
        %s483 = sand.u32 %s128, 1
        %s484 = sand.u32 %s128, 1
        %s485 = smul.addr %s484, 8
        %s486 = scalar_lea.vmem [#allocation5], %s485
        // Predicated region
        $region45: #{mla_forward.5} parent=31 // pred_check
          %p487 = pneg %p138
        $region46: #{mla_forward.5} parent=31 // pred_check_branch
          %489 = sbr.rel (%p487) target = $region48
        $region47: #{mla_forward.5} parent=31 // pred_region
          %s490 = smul.u32 2, %s22
          %s491 = smul.addr %s490, 3
          %s492 = sadd.s32 %s23, %s491
          %s493 = smul.addr %s492, 4
          %s494 = scalar_lea.vmem %s3, %s493
          // Predicated region
          $region49: #{mla_forward.5} parent=47 // pred_check
            _
          $region50: #{mla_forward.5} parent=47 // pred_check_branch
            %496 = sbr.rel (0) target = $region52
          $region51: #{mla_forward.5} parent=47 // pred_region
            // Predicated region
            $region53: #{mla_forward.5} parent=51 // pred_check
              _
            $region54: #{mla_forward.5} parent=51 // pred_check_branch
              %498 = sbr.rel target = $region56
            $region55: #{mla_forward.5} parent=51 // pred_region
              // Predicated region
              $region68: #{mla_forward.5} parent=55 // pred_check
                _
              $region69: #{mla_forward.5} parent=55 // pred_check_branch
                %515 = sbr.rel (0) target = $region71
              $region70: #{mla_forward.5} parent=55 // pred_region
                loop: start=0, step=1, limit=1
                $region72: #{mla_forward.5} parent=70 // loop_pre_header
                  _
                $region73: #{mla_forward.5} parent=70 // loop_header
                  %s517 = sphi 0, %s521
                  %p518 = scmp.ge.s32.totalorder %s517, 1
                  %s522 = sphi %s486, %s486
                  %s523 = sphi %s494, %s494
                $region74: #{mla_forward.5} parent=70 // loop_header_branch
                  %520 = sbr.rel (%p518) target = $region78
                $region75: #{mla_forward.5} parent=70 // loop_body
                  _
                $region76: #{mla_forward.5} parent=70 // loop_footer
                  %s521 = sadd.s32 1, %s517
                $region77: #{mla_forward.5} parent=70 // loop_footer_branch
                  %516 = sbr.rel target = $region73
                $region78: #{mla_forward.5} parent=70 // loop_exit
                  _
                loop: start=0, step=1, limit=1
                $region79: #{mla_forward.5} parent=70 // loop_pre_header
                  _
                $region80: #{mla_forward.5} parent=70 // loop_header
                  %s526 = sphi 0, %s530
                  %p527 = scmp.ge.s32.totalorder %s526, 1
                  %s531 = sphi %s486, %s486
                  %s532 = sphi %s494, %s494
                $region81: #{mla_forward.5} parent=70 // loop_header_branch
                  %529 = sbr.rel (%p527) target = $region85
                $region82: #{mla_forward.5} parent=70 // loop_body
                  %v533 = vld [vmem:[%s531] sm:$0xf]
                  %534 = vst [vmem:[%s532] sm:$0xf] %v533
                  %v535 = vld [vmem:[%s531 + $0x4] sm:$0xf]
                  %536 = vst [vmem:[%s532 + $0xc] sm:$0xf] %v535
                $region83: #{mla_forward.5} parent=70 // loop_footer
                  %s530 = sadd.s32 1, %s526
                $region84: #{mla_forward.5} parent=70 // loop_footer_branch
                  %525 = sbr.rel target = $region80
                $region85: #{mla_forward.5} parent=70 // loop_exit
                  _
              $region71: #{mla_forward.5} parent=55 // pred_fallthru
                _
            $region56: #{mla_forward.5} parent=51 // pred_fallthru
              _
            // Predicated region
            $region57: #{mla_forward.5} parent=51 // pred_check
              _
            $region58: #{mla_forward.5} parent=51 // pred_check_branch
              %500 = sbr.rel (0) target = $region60
            $region59: #{mla_forward.5} parent=51 // pred_region
              loop: start=0, step=1, limit=1
              $region61: #{mla_forward.5} parent=59 // loop_pre_header
                _
              $region62: #{mla_forward.5} parent=59 // loop_header
                %s503 = sphi 0, %s507
                %p504 = scmp.ge.s32.totalorder %s503, 1
                %s508 = sphi %s486, %s486
                %s509 = sphi %s494, %s494
              $region63: #{mla_forward.5} parent=59 // loop_header_branch
                %506 = sbr.rel (%p504) target = $region67
              $region64: #{mla_forward.5} parent=59 // loop_body
                %v510 = vld [vmem:[%s508] sm:$0xf]
                %511 = vst [vmem:[%s509] sm:$0xf] %v510
                %v512 = vld [vmem:[%s508 + $0x4] sm:$0xf]
                %513 = vst [vmem:[%s509 + $0xc] sm:$0xf] %v512
              $region65: #{mla_forward.5} parent=59 // loop_footer
                %s507 = sadd.s32 1, %s503
              $region66: #{mla_forward.5} parent=59 // loop_footer_branch
                %502 = sbr.rel target = $region62
              $region67: #{mla_forward.5} parent=59 // loop_exit
                _
            $region60: #{mla_forward.5} parent=51 // pred_fallthru
              _
          $region52: #{mla_forward.5} parent=47 // pred_fallthru
            _
          %537 = vnop
        $region48: #{mla_forward.5} parent=31 // pred_fallthru
          _
      $region32: #{mla_forward.5} parent=5 // pred_fallthru
        _
      %p538 = scmp.le.s32.totalorder 2, %s12
      // Predicated region
      $region86: #{mla_forward.5} parent=5 // pred_check
        %p539 = pneg %p538
      $region87: #{mla_forward.5} parent=5 // pred_check_branch
        %541 = sbr.rel (%p539) target = $region89
      $region88: #{mla_forward.5} parent=5 // pred_region
        %s542 = ssub.s32 %s12, 2
        // Predicated region
        $region90: #{mla_forward.5} parent=88 // pred_check
          %p543 = pneg %p144
        $region91: #{mla_forward.5} parent=88 // pred_check_branch
          %545 = sbr.rel (%p543) target = $region93
        $region92: #{mla_forward.5} parent=88 // pred_region
          %s546 = sand.u32 %s129, 1
          %s547 = sand.u32 %s129, 1
          %s548 = smul.addr %s547, 8
          %s549 = scalar_lea.vmem [#allocation5], %s548
        $region93: #{mla_forward.5} parent=88 // pred_fallthru
          _
      $region89: #{mla_forward.5} parent=5 // pred_fallthru
        _
    $region6: #{mla_forward.5} parent=1 // loop_footer
      %s16 = sadd.s32 1, %s12
    $region7: #{mla_forward.5} parent=1 // loop_footer_branch
      %11 = sbr.rel target = $region3
    $region8: #{mla_forward.5} parent=1 // loop_exit
      _
    %550 = vsyncpa [#allocation4], 1
    %s551 = scalar_lea.sflag [#allocation4], 1
    %552 = vsyncpa %s551, 1

// kernel: mla_forward.7
$region0: #{mla_forward.7}
  #allocation0 [shape = 'u32[]', space=smem, size = 0x4, offset = 0x4, fixed_abs, tag = 'smem constant byte address 0x4 - core index']
  #allocation1 [shape = 'u32[144,128]{1,0:T(1,128)}', space=vmem, size = 0x12000, scoped, tag = 'internal scratch']
  #allocation2 [shape = 'f32[16,256]{1,0:T(8,128)}', space=vmem, size = 0x4000, scoped, tag = 'scratch operand']
  %s0 = inlined_call_operand.vmem [shape: bf16[16,128], index: 0, kind: input, shape index: {}]
  %s1 = inlined_call_operand.vmem [shape: bf16[128,512], index: 1, kind: input, shape index: {}]
  %s2 = inlined_call_operand.vmem [shape: f32[1,512], index: 2, kind: input, shape index: {}]
  %s3 = inlined_call_operand.vmem [shape: bf16[16,512], index: 3, kind: output, shape index: {}]
  %s4 = sld [smem:[#allocation0]]
  $region125: #{mla_forward.7} parent=0
    _
  %s6 = ssub.s32 1, %s4
  %s7 = scalar_select 0, %s6, %s4
  $region1: #{mla_forward.7} parent=0
    #allocation3 [shape = 'u8[131072]{0}', space=vmem, size = 0x20000, scoped, tag = 'input window, operand 1']
    #allocation4 [shape = 'u8[16384]{0}', space=vmem, size = 0x4000, scoped, tag = 'output window, operand 0']
    loop: start=0, step=1, limit=4
    $region2: #{mla_forward.7} parent=1 // loop_pre_header
      _
    $region3: #{mla_forward.7} parent=1 // loop_header
      %s9 = sphi 0, %s13
      %p10 = scmp.ge.s32.totalorder %s9, 4
      %s16 = sphi 0, %s35
      %s17 = sphi 0, %s31
      %s18 = sphi 0, %s27
      %s19 = sphi 0, %s16
      %s20 = sphi 0, %s17
      %s21 = sphi 0, %s18
      %s22 = sphi 0, %s19
      %s23 = sphi 0, %s20
      %s24 = sphi 0, %s21
      %s40 = sphi 0, %s42
      %s43 = sphi 0, %s40
      %s44 = sphi 0, %s43
      %s60 = sphi 0, %s44
      %s68 = sphi 0, %s70
      %s71 = sphi 0, %s68
      %s72 = sphi 0, %s71
      %s88 = sphi 0, %s72
      %s94 = sphi 0, %s96
      %s97 = sphi 0, %s94
      %s98 = sphi 0, %s97
      %s114 = sphi 0, %s98
      %s122 = sphi 0, %s124
      %s125 = sphi 0, %s122
      %s126 = sphi 0, %s125
      %s142 = sphi 0, %s126
    $region4: #{mla_forward.7} parent=1 // loop_header_branch
      %12 = sbr.rel (%p10) target = $region8
    $region5: #{mla_forward.7} parent=1 // loop_body
      %s14 = ssub.s32 %s9, 1
      %s15 = ssub.s32 %s9, 2
      %s25 = sadd.s32 1, %s18
      %p26 = scmp.ge.s32.totalorder %s25, 1
      %s27 = scalar_select %p26, 0, %s25
      %s28 = sadd.s32 1, %s17
      %s29 = scalar_select %p26, %s28, %s17
      %p30 = scmp.ge.s32.totalorder %s29, 2
      %s31 = scalar_select %p30, 0, %s29
      %s32 = sadd.s32 1, %s16
      %s33 = scalar_select %p30, %s32, %s16
      %p34 = scmp.ge.s32.totalorder %s33, 1
      %s35 = scalar_select %p34, 0, %s33
      %s36 = ssub.s32 %s16, %s35
      %s37 = ssub.s32 %s18, %s27
      %s38 = sor.u32 %s36, %s37
      %p39 = scmp.eq.s32.totalorder %s38, 0
      %s41 = sadd.s32 %s40, 1
      %s42 = scalar_select %p39, %s40, %s41
      %p45 = pneg %p39
      %p46 = scmp.eq.s32.totalorder %s9, 1
      %p47 = por %p45, %p46
      %p48 = scmp.ne.s32.totalorder %s40, %s43
      %p49 = scmp.eq.s32.totalorder %s9, 0
      %p50 = por %p48, %p49
      %p51 = scmp.ne.s32.totalorder %s40, %s43
      %p52 = scmp.eq.s32.totalorder %s14, 1
      %p53 = por %p51, %p52
      %p54 = scmp.ne.s32.totalorder %s43, %s44
      %p55 = scmp.eq.s32.totalorder %s14, 0
      %p56 = por %p54, %p55
      %p57 = scmp.ne.s32.totalorder %s43, %s44
      %p58 = scmp.eq.s32.totalorder %s15, 1
      %p59 = por %p57, %p58
      %p61 = scmp.ne.s32.totalorder %s44, %s60
      %p62 = scmp.eq.s32.totalorder %s15, 0
      %p63 = por %p61, %p62
      %s64 = ssub.s32 %s18, %s27
      %s65 = ssub.s32 %s17, %s31
      %s66 = sor.u32 %s64, %s65
      %p67 = scmp.eq.s32.totalorder %s66, 0
      %s69 = sadd.s32 %s68, 1
      %s70 = scalar_select %p67, %s68, %s69
      %p73 = pneg %p67
      %p74 = scmp.eq.s32.totalorder %s9, 1
      %p75 = por %p73, %p74
      %p76 = scmp.ne.s32.totalorder %s68, %s71
      %p77 = scmp.eq.s32.totalorder %s9, 0
      %p78 = por %p76, %p77
      %p79 = scmp.ne.s32.totalorder %s68, %s71
      %p80 = scmp.eq.s32.totalorder %s14, 1
      %p81 = por %p79, %p80
      %p82 = scmp.ne.s32.totalorder %s71, %s72
      %p83 = scmp.eq.s32.totalorder %s14, 0
      %p84 = por %p82, %p83
      %p85 = scmp.ne.s32.totalorder %s71, %s72
      %p86 = scmp.eq.s32.totalorder %s15, 1
      %p87 = por %p85, %p86
      %p89 = scmp.ne.s32.totalorder %s72, %s88
      %p90 = scmp.eq.s32.totalorder %s15, 0
      %p91 = por %p89, %p90
      %s92 = ssub.s32 %s17, %s31
      %p93 = scmp.eq.s32.totalorder %s92, 0
      %s95 = sadd.s32 %s94, 1
      %s96 = scalar_select %p93, %s94, %s95
      %p99 = pneg %p93
      %p100 = scmp.eq.s32.totalorder %s9, 1
      %p101 = por %p99, %p100
      %p102 = scmp.ne.s32.totalorder %s94, %s97
      %p103 = scmp.eq.s32.totalorder %s9, 0
      %p104 = por %p102, %p103
      %p105 = scmp.ne.s32.totalorder %s94, %s97
      %p106 = scmp.eq.s32.totalorder %s14, 1
      %p107 = por %p105, %p106
      %p108 = scmp.ne.s32.totalorder %s97, %s98
      %p109 = scmp.eq.s32.totalorder %s14, 0
      %p110 = por %p108, %p109
      %p111 = scmp.ne.s32.totalorder %s97, %s98
      %p112 = scmp.eq.s32.totalorder %s15, 1
      %p113 = por %p111, %p112
      %p115 = scmp.ne.s32.totalorder %s98, %s114
      %p116 = scmp.eq.s32.totalorder %s15, 0
      %p117 = por %p115, %p116
      %s118 = ssub.s32 %s16, %s35
      %s119 = ssub.s32 %s17, %s31
      %s120 = sor.u32 %s118, %s119
      %p121 = scmp.eq.s32.totalorder %s120, 0
      %s123 = sadd.s32 %s122, 1
      %s124 = scalar_select %p121, %s122, %s123
      %p127 = pneg %p121
      %p128 = scmp.eq.s32.totalorder %s9, 1
      %p129 = por %p127, %p128
      %p130 = scmp.ne.s32.totalorder %s122, %s125
      %p131 = scmp.eq.s32.totalorder %s9, 0
      %p132 = por %p130, %p131
      %p133 = scmp.ne.s32.totalorder %s122, %s125
      %p134 = scmp.eq.s32.totalorder %s14, 1
      %p135 = por %p133, %p134
      %p136 = scmp.ne.s32.totalorder %s125, %s126
      %p137 = scmp.eq.s32.totalorder %s14, 0
      %p138 = por %p136, %p137
      %p139 = scmp.ne.s32.totalorder %s125, %s126
      %p140 = scmp.eq.s32.totalorder %s15, 1
      %p141 = por %p139, %p140
      %p143 = scmp.ne.s32.totalorder %s126, %s142
      %p144 = scmp.eq.s32.totalorder %s15, 0
      %p145 = por %p143, %p144
      %p146 = scmp.le.s32.totalorder 1, %s9
      %p147 = scmp.lt.s32.totalorder %s9, 3
      %p148 = pnand %p146, %p147
      %p149 = pneg %p148
      // Predicated region
      $region9: #{mla_forward.7} parent=5 // pred_check
        _
      $region10: #{mla_forward.7} parent=5 // pred_check_branch
        %151 = sbr.rel (%p148) target = $region12
      $region11: #{mla_forward.7} parent=5 // pred_region
        %s152 = ssub.s32 %s9, 1
        // Predicated region
        $region13: #{mla_forward.7} parent=11 // pred_check
          %p153 = pneg %p56
        $region14: #{mla_forward.7} parent=11 // pred_check_branch
          %155 = sbr.rel (%p153) target = $region16
        $region15: #{mla_forward.7} parent=11 // pred_region
          %s156 = smul.u32 2, %s19
          %p157 = scmp.lt.s32.totalorder %s156, 1
          %s158 = scalar_select %p157, %s156, 1
          %p159 = scmp.lt.s32.totalorder %s21, 0
          %s160 = scalar_select %p159, %s21, 0
          %s161 = sadd.s32 %s160, %s158
          %s162 = smul.addr %s161, 4
          %s163 = scalar_lea.vmem %s0, %s162
          %s164 = smul.u32 2, %s19
        $region16: #{mla_forward.7} parent=11 // pred_fallthru
          _
      $region12: #{mla_forward.7} parent=5 // pred_fallthru
        _
      %p165 = scmp.lt.s32.totalorder %s9, 2
      // Predicated region
      $region17: #{mla_forward.7} parent=5 // pred_check
        %p166 = pneg %p165
      $region18: #{mla_forward.7} parent=5 // pred_check_branch
        %168 = sbr.rel (%p166) target = $region20
      $region19: #{mla_forward.7} parent=5 // pred_region
        // Predicated region
        $region21: #{mla_forward.7} parent=19 // pred_check
          %p169 = pneg %p78
        $region22: #{mla_forward.7} parent=19 // pred_check_branch
          %171 = sbr.rel (%p169) target = $region24
        $region23: #{mla_forward.7} parent=19 // pred_region
          %s172 = sand.u32 %s68, 1
          %s173 = sand.u32 %s68, 1
          %s174 = smul.addr %s173, 128
          %s175 = scalar_lea.vmem [#allocation3], %s174
          %s176 = smul.u32 16, %s18
          %s177 = smul.u32 2, %s17
          %s178 = smul.addr %s176, 4
          %s179 = sadd.s32 %s177, %s178
          %s180 = smul.addr %s179, 4
          %s181 = scalar_lea.vmem %s1, %s180
          // Predicated region
          $region25: #{mla_forward.7} parent=23 // pred_check
            _
          $region26: #{mla_forward.7} parent=23 // pred_check_branch
            %183 = sbr.rel (0) target = $region28
          $region27: #{mla_forward.7} parent=23 // pred_region
            // Predicated region
            $region29: #{mla_forward.7} parent=27 // pred_check
              _
            $region30: #{mla_forward.7} parent=27 // pred_check_branch
              %185 = sbr.rel (0) target = $region32
            $region31: #{mla_forward.7} parent=27 // pred_region
              // Predicated region
              $region44: #{mla_forward.7} parent=31 // pred_check
                _
              $region45: #{mla_forward.7} parent=31 // pred_check_branch
                %230 = sbr.rel (0) target = $region47
              $region46: #{mla_forward.7} parent=31 // pred_region
                loop: start=0, step=1, limit=1
                $region48: #{mla_forward.7} parent=46 // loop_pre_header
                  _
                $region49: #{mla_forward.7} parent=46 // loop_header
                  %s232 = sphi 0, %s236
                  %p233 = scmp.ge.s32.totalorder %s232, 1
                  %s237 = sphi %s181, %s181
                  %s238 = sphi %s175, %s175
                $region50: #{mla_forward.7} parent=46 // loop_header_branch
                  %235 = sbr.rel (%p233) target = $region54
                $region51: #{mla_forward.7} parent=46 // loop_body
                  %v239 = vld [vmem:[%s237] sm:$0xff]
                  %240 = vst [vmem:[%s238] sm:$0xff] %v239
                  %v241 = vld [vmem:[%s237 + $0x10] sm:$0xff]
                  %242 = vst [vmem:[%s238 + $0x8] sm:$0xff] %v241
                  %v243 = vld [vmem:[%s237 + $0x20] sm:$0xff]
                  %244 = vst [vmem:[%s238 + $0x10] sm:$0xff] %v243
                  %v245 = vld [vmem:[%s237 + $0x30] sm:$0xff]
                  %246 = vst [vmem:[%s238 + $0x18] sm:$0xff] %v245
                  %v247 = vld [vmem:[%s237 + $0x40] sm:$0xff]
                  %248 = vst [vmem:[%s238 + $0x20] sm:$0xff] %v247
                  %v249 = vld [vmem:[%s237 + $0x50] sm:$0xff]
                  %250 = vst [vmem:[%s238 + $0x28] sm:$0xff] %v249
                  %v251 = vld [vmem:[%s237 + $0x60] sm:$0xff]
                  %252 = vst [vmem:[%s238 + $0x30] sm:$0xff] %v251
                  %v253 = vld [vmem:[%s237 + $0x70] sm:$0xff]
                  %254 = vst [vmem:[%s238 + $0x38] sm:$0xff] %v253
                  %v255 = vld [vmem:[%s237 + $0x80] sm:$0xff]
                  %256 = vst [vmem:[%s238 + $0x40] sm:$0xff] %v255
                  %v257 = vld [vmem:[%s237 + $0x90] sm:$0xff]
                  %258 = vst [vmem:[%s238 + $0x48] sm:$0xff] %v257
                  %v259 = vld [vmem:[%s237 + $0xa0] sm:$0xff]
                  %260 = vst [vmem:[%s238 + $0x50] sm:$0xff] %v259
                  %v261 = vld [vmem:[%s237 + $0xb0] sm:$0xff]
                  %262 = vst [vmem:[%s238 + $0x58] sm:$0xff] %v261
                  %v263 = vld [vmem:[%s237 + $0xc0] sm:$0xff]
                  %264 = vst [vmem:[%s238 + $0x60] sm:$0xff] %v263
                  %v265 = vld [vmem:[%s237 + $0xd0] sm:$0xff]
                  %266 = vst [vmem:[%s238 + $0x68] sm:$0xff] %v265
                  %v267 = vld [vmem:[%s237 + $0xe0] sm:$0xff]
                  %268 = vst [vmem:[%s238 + $0x70] sm:$0xff] %v267
                  %v269 = vld [vmem:[%s237 + $0xf0] sm:$0xff]
                  %270 = vst [vmem:[%s238 + $0x78] sm:$0xff] %v269
                $region52: #{mla_forward.7} parent=46 // loop_footer
                  %s236 = sadd.s32 1, %s232
                $region53: #{mla_forward.7} parent=46 // loop_footer_branch
                  %231 = sbr.rel target = $region49
                $region54: #{mla_forward.7} parent=46 // loop_exit
                  _
              $region47: #{mla_forward.7} parent=31 // pred_fallthru
                _
              // Predicated region
              $region55: #{mla_forward.7} parent=31 // pred_check
                _
              $region56: #{mla_forward.7} parent=31 // pred_check_branch
                %272 = sbr.rel target = $region58
              $region57: #{mla_forward.7} parent=31 // pred_region
                _
              $region58: #{mla_forward.7} parent=31 // pred_fallthru
                _
            $region32: #{mla_forward.7} parent=27 // pred_fallthru
              _
            // Predicated region
            $region33: #{mla_forward.7} parent=27 // pred_check
              _
            $region34: #{mla_forward.7} parent=27 // pred_check_branch
              %187 = sbr.rel target = $region36
            $region35: #{mla_forward.7} parent=27 // pred_region
              loop: start=0, step=1, limit=1
              $region37: #{mla_forward.7} parent=35 // loop_pre_header
                _
              $region38: #{mla_forward.7} parent=35 // loop_header
                %s190 = sphi 0, %s194
                %p191 = scmp.ge.s32.totalorder %s190, 1
                %s195 = sphi %s181, %s181
                %s196 = sphi %s175, %s175
              $region39: #{mla_forward.7} parent=35 // loop_header_branch
                %193 = sbr.rel (%p191) target = $region43
              $region40: #{mla_forward.7} parent=35 // loop_body
                %v197 = vld [vmem:[%s195] sm:$0xff]
                %198 = vst [vmem:[%s196] sm:$0xff] %v197
                %v199 = vld [vmem:[%s195 + $0x10] sm:$0xff]
                %200 = vst [vmem:[%s196 + $0x8] sm:$0xff] %v199
                %v201 = vld [vmem:[%s195 + $0x20] sm:$0xff]
                %202 = vst [vmem:[%s196 + $0x10] sm:$0xff] %v201
                %v203 = vld [vmem:[%s195 + $0x30] sm:$0xff]
                %204 = vst [vmem:[%s196 + $0x18] sm:$0xff] %v203
                %v205 = vld [vmem:[%s195 + $0x40] sm:$0xff]
                %206 = vst [vmem:[%s196 + $0x20] sm:$0xff] %v205
                %v207 = vld [vmem:[%s195 + $0x50] sm:$0xff]
                %208 = vst [vmem:[%s196 + $0x28] sm:$0xff] %v207
                %v209 = vld [vmem:[%s195 + $0x60] sm:$0xff]
                %210 = vst [vmem:[%s196 + $0x30] sm:$0xff] %v209
                %v211 = vld [vmem:[%s195 + $0x70] sm:$0xff]
                %212 = vst [vmem:[%s196 + $0x38] sm:$0xff] %v211
                %v213 = vld [vmem:[%s195 + $0x80] sm:$0xff]
                %214 = vst [vmem:[%s196 + $0x40] sm:$0xff] %v213
                %v215 = vld [vmem:[%s195 + $0x90] sm:$0xff]
                %216 = vst [vmem:[%s196 + $0x48] sm:$0xff] %v215
                %v217 = vld [vmem:[%s195 + $0xa0] sm:$0xff]
                %218 = vst [vmem:[%s196 + $0x50] sm:$0xff] %v217
                %v219 = vld [vmem:[%s195 + $0xb0] sm:$0xff]
                %220 = vst [vmem:[%s196 + $0x58] sm:$0xff] %v219
                %v221 = vld [vmem:[%s195 + $0xc0] sm:$0xff]
                %222 = vst [vmem:[%s196 + $0x60] sm:$0xff] %v221
                %v223 = vld [vmem:[%s195 + $0xd0] sm:$0xff]
                %224 = vst [vmem:[%s196 + $0x68] sm:$0xff] %v223
                %v225 = vld [vmem:[%s195 + $0xe0] sm:$0xff]
                %226 = vst [vmem:[%s196 + $0x70] sm:$0xff] %v225
                %v227 = vld [vmem:[%s195 + $0xf0] sm:$0xff]
                %228 = vst [vmem:[%s196 + $0x78] sm:$0xff] %v227
              $region41: #{mla_forward.7} parent=35 // loop_footer
                %s194 = sadd.s32 1, %s190
              $region42: #{mla_forward.7} parent=35 // loop_footer_branch
                %189 = sbr.rel target = $region38
              $region43: #{mla_forward.7} parent=35 // loop_exit
                _
            $region36: #{mla_forward.7} parent=27 // pred_fallthru
              _
          $region28: #{mla_forward.7} parent=23 // pred_fallthru
            _
          %273 = vnop
        $region24: #{mla_forward.7} parent=19 // pred_fallthru
          _
        // Predicated region
        $region59: #{mla_forward.7} parent=19 // pred_check
          %p274 = pneg %p104
        $region60: #{mla_forward.7} parent=19 // pred_check_branch
          %276 = sbr.rel (%p274) target = $region62
        $region61: #{mla_forward.7} parent=19 // pred_region
          %s277 = smul.u32 2, %s17
          %p278 = scmp.lt.s32.totalorder %s277, 3
          %s279 = scalar_select %p278, %s277, 3
          %s280 = scalar_lea.vmem %s2, %s279
          %s281 = smul.u32 2, %s17
        $region62: #{mla_forward.7} parent=19 // pred_fallthru
          _
      $region20: #{mla_forward.7} parent=5 // pred_fallthru
        _
      %p282 = scmp.le.s32.totalorder 1, %s9
      %p283 = scmp.lt.s32.totalorder %s9, 3
      %p284 = pnand %p282, %p283
      %p285 = pneg %p284
      // Predicated region
      $region63: #{mla_forward.7} parent=5 // pred_check
        _
      $region64: #{mla_forward.7} parent=5 // pred_check_branch
        %287 = sbr.rel (%p284) target = $region66
      $region65: #{mla_forward.7} parent=5 // pred_region
        %s288 = ssub.s32 %s9, 1
        %s289 = sand.u32 %s71, 1
        %s290 = sand.u32 %s71, 1
        %s291 = smul.addr %s290, 128
        %s292 = scalar_lea.vmem [#allocation3], %s291
        // Predicated region
        $region67: #{mla_forward.7} parent=65 // pred_check
          %p293 = pneg %p84
        $region68: #{mla_forward.7} parent=65 // pred_check_branch
          %295 = sbr.rel (%p293) target = $region70
        $region69: #{mla_forward.7} parent=65 // pred_region
          _
        $region70: #{mla_forward.7} parent=65 // pred_fallthru
          _
        %s296 = smul.u32 2, %s19
        %p297 = scmp.lt.s32.totalorder %s296, 1
        %s298 = scalar_select %p297, %s296, 1
        %p299 = scmp.lt.s32.totalorder %s21, 0
        %s300 = scalar_select %p299, %s21, 0
        %s301 = sadd.s32 %s300, %s298
        %s302 = smul.addr %s301, 4
        %s303 = scalar_lea.vmem %s0, %s302
        %p304 = pneg %p56
        %p305 = pneg %p53
        %s306 = sand.u32 %s71, 1
        %s307 = sand.u32 %s71, 1
        %s308 = smul.addr %s307, 128
        %s309 = scalar_lea.vmem [#allocation3], %s308
        %p310 = pneg %p84
        %p311 = pneg %p81
        %s312 = smul.u32 2, %s20
        %p313 = scmp.lt.s32.totalorder %s312, 3
        %s314 = scalar_select %p313, %s312, 3
        %s315 = scalar_lea.vmem %s2, %s314
        %p316 = pneg %p110
        %p317 = pneg %p107
        %p318 = pneg %p138
        %p319 = pneg %p135
        %s320 = sand.u32 %s125, 1
        %s321 = sand.u32 %s125, 1
        %s322 = smul.addr %s321, 16
        %s323 = scalar_lea.vmem [#allocation4], %s322
        %s324 = smul.u32 2, %s19
        %p325 = scmp.lt.s32.totalorder %s324, 1
        %s326 = scalar_select %p325, %s324, 1
        %p327 = scmp.lt.s32.totalorder %s21, 0
        %s328 = scalar_select %p327, %s21, 0
        %s329 = sadd.s32 %s328, %s326
        %s330 = smul.addr %s329, 4
        %s331 = scalar_lea.vmem %s0, %s330
        %s332 = smul.u32 2, %s19
        %s333 = smul.u32 16, %s21
        %s334 = smul.u32 2, %s20
        %s335 = smul.u32 2, %s20
        %p336 = scmp.lt.s32.totalorder %s335, 3
        %s337 = scalar_select %p336, %s335, 3
        %s338 = scalar_lea.vmem %s2, %s337
        %s339 = smul.u32 2, %s20
        %s340 = smul.u32 2, %s19
        %s341 = smul.u32 2, %s20
        %p343 = scmp.eq.s32.totalorder %s21, 0
        // Predicated region
        $region71: #{mla_forward.7} parent=65 // pred_check
          %p344 = pneg %p343
        $region72: #{mla_forward.7} parent=65 // pred_check_branch
          %346 = sbr.rel (%p344) target = $region74
        $region73: #{mla_forward.7} parent=65 // pred_region
          %v347 = vld [vmem:[%s338] sm:$0x3]
          %v349 = vlaneseq
          %v350 = vshrl.u32 %v349, 7
          %v351 = vsub.s32 0, %v350
          %v352 = vrot.slane %v347, %v351
          %v353 = vlaneseq
          %v354 = vshrl.u32 %v353, 7
          %v355 = vsub.s32 1, %v354
          %v356 = vrot.slane %v347, %v355
          %359 = vst [vmem:[#allocation2] sm:$0xff] %v352
          %360 = vst [vmem:[#allocation2 + $0x8] sm:$0xff] %v356
          %361 = vst [vmem:[#allocation2 + $0x10] sm:$0xff] %v352
          %362 = vst [vmem:[#allocation2 + $0x18] sm:$0xff] %v356
        $region74: #{mla_forward.7} parent=65 // pred_fallthru
          _
        %v363 = vld [vmem:[#allocation2] sm:$0xff]
        %v364 = vld [vmem:[#allocation2 + $0x8] sm:$0xff]
        %v365 = vld [vmem:[#allocation2 + $0x10] sm:$0xff]
        %v366 = vld [vmem:[#allocation2 + $0x18] sm:$0xff]
        %v367 = vld [vmem:[%s331] sm:$0xf]
        %v368 = vld [vmem:[%s331 + $0x4] sm:$0xf]
        %v369 = vld [vmem:[%s292] sm:$0xff]
        %v370 = vld [vmem:[%s292 + $0x8] sm:$0xff]
        %v371 = vld [vmem:[%s292 + $0x10] sm:$0xff]
        %v372 = vld [vmem:[%s292 + $0x18] sm:$0xff]
        %v373 = vld [vmem:[%s292 + $0x20] sm:$0xff]
        %v374 = vld [vmem:[%s292 + $0x28] sm:$0xff]
        %v375 = vld [vmem:[%s292 + $0x30] sm:$0xff]
        %v376 = vld [vmem:[%s292 + $0x38] sm:$0xff]
        %v377 = vld [vmem:[%s292 + $0x40] sm:$0xff]
        %v378 = vld [vmem:[%s292 + $0x48] sm:$0xff]
        %v379 = vld [vmem:[%s292 + $0x50] sm:$0xff]
        %v380 = vld [vmem:[%s292 + $0x58] sm:$0xff]
        %v381 = vld [vmem:[%s292 + $0x60] sm:$0xff]
        %v382 = vld [vmem:[%s292 + $0x68] sm:$0xff]
        %v383 = vld [vmem:[%s292 + $0x70] sm:$0xff]
        %v384 = vld [vmem:[%s292 + $0x78] sm:$0xff]
        %v387 = vunpack.c.l.b16 %v367
        %v388 = vunpack.c.l.b16 %v368
        %v389 = vpack.c.b16 %v388, %v387
        %v407 = vunpack.c.l.b16 %v369
        %v408 = vunpack.c.h.b16 %v369
        %v409 = vunpack.c.l.b16 %v370
        %v410 = vunpack.c.h.b16 %v370
        %v411 = vunpack.c.l.b16 %v371
        %v412 = vunpack.c.h.b16 %v371
        %v413 = vunpack.c.l.b16 %v372
        %v414 = vunpack.c.h.b16 %v372
        %v415 = vunpack.c.l.b16 %v373
        %v416 = vunpack.c.h.b16 %v373
        %v417 = vunpack.c.l.b16 %v374
        %v418 = vunpack.c.h.b16 %v374
        %v419 = vunpack.c.l.b16 %v375
        %v420 = vunpack.c.h.b16 %v375
        %v421 = vunpack.c.l.b16 %v376
        %v422 = vunpack.c.h.b16 %v376
        %v423 = vunpack.c.l.b16 %v377
        %v424 = vunpack.c.h.b16 %v377
        %v425 = vunpack.c.l.b16 %v378
        %v426 = vunpack.c.h.b16 %v378
        %v427 = vunpack.c.l.b16 %v379
        %v428 = vunpack.c.h.b16 %v379
        %v429 = vunpack.c.l.b16 %v380
        %v430 = vunpack.c.h.b16 %v380
        %v431 = vunpack.c.l.b16 %v381
        %v432 = vunpack.c.h.b16 %v381
        %v433 = vunpack.c.l.b16 %v382
        %v434 = vunpack.c.h.b16 %v382
        %v435 = vunpack.c.l.b16 %v383
        %v436 = vunpack.c.h.b16 %v383
        %v437 = vunpack.c.l.b16 %v384
        %v438 = vunpack.c.h.b16 %v384
        %v439 = vpack.c.b16 %v409, %v407
        %v440 = vpack.c.b16 %v410, %v408
        %v441 = vpack.c.b16 %v413, %v411
        %v442 = vpack.c.b16 %v414, %v412
        %v443 = vpack.c.b16 %v417, %v415
        %v444 = vpack.c.b16 %v418, %v416
        %v445 = vpack.c.b16 %v421, %v419
        %v446 = vpack.c.b16 %v422, %v420
        %v447 = vpack.c.b16 %v425, %v423
        %v448 = vpack.c.b16 %v426, %v424
        %v449 = vpack.c.b16 %v429, %v427
        %v450 = vpack.c.b16 %v430, %v428
        %v451 = vpack.c.b16 %v433, %v431
        %v452 = vpack.c.b16 %v434, %v432
        %v453 = vpack.c.b16 %v437, %v435
        %v454 = vpack.c.b16 %v438, %v436
        %471 = vmatprep.subr.bf16.mxu0 %v440
        %472 = vmatpush1.bf16.msra.mxu0 %v439
        %473 = vmatprep.subr.bf16.mxu0 %v442
        %474 = vmatpush1.bf16.msra.mxu0 %v441
        %475 = vmatprep.subr.bf16.mxu0 %v444
        %476 = vmatpush1.bf16.msra.mxu0 %v443
        %477 = vmatprep.subr.bf16.mxu0 %v446
        %478 = vmatpush1.bf16.msra.mxu0 %v445
        %479 = vmatprep.subr.bf16.mxu0 %v448
        %480 = vmatpush1.bf16.msra.mxu0 %v447
        %481 = vmatprep.subr.bf16.mxu0 %v450
        %482 = vmatpush1.bf16.msra.mxu0 %v449
        %483 = vmatprep.subr.bf16.mxu0 %v452
        %484 = vmatpush1.bf16.msra.mxu0 %v451
        %485 = vmatprep.subr.bf16.mxu0 %v454
        %486 = vmatpush1.bf16.msra.mxu0 %v453
        %487 = vmatprep.subr.bf16.mxu0 0
        %488 = vmatpush1.bf16.msra.mxu0 0
        %489 = vmatprep.subr.bf16.mxu0 0
        %490 = vmatpush1.bf16.msra.mxu0 0
        %491 = vmatprep.subr.bf16.mxu0 0
        %492 = vmatpush1.bf16.msra.mxu0 0
        %493 = vmatprep.subr.bf16.mxu0 0
        %494 = vmatpush1.bf16.msra.mxu0 0
        %495 = vmatprep.subr.bf16.mxu0 0
        %496 = vmatpush1.bf16.msra.mxu0 0
        %497 = vmatprep.subr.bf16.mxu0 0
        %498 = vmatpush1.bf16.msra.mxu0 0
        %499 = vmatprep.subr.bf16.mxu0 0
        %500 = vmatpush1.bf16.msra.mxu0 0
        %501 = vmatprep.subr.bf16.mxu0 0
        %502 = vmatpush1.bf16.msra.mxu0 0
        %503 = vmatprep.mubr.bf16.mxu0 0
        %504 = vmatmul.mubr.bf16.gmra.mrb[0].mxu0 %v389
        %v505 = vpop.f32.mrb[0].mxu0
        %v506 = vadd.f32 0.0, %v505
        %v507 = vpop.f32.mrb[0].mxu0
        %v508 = vadd.f32 0.0, %v507
        %v509 = vpop.f32.mrb[0].mxu0
        %v510 = vadd.f32 0.0, %v509
        %v511 = vpop.f32.mrb[0].mxu0
        %v512 = vadd.f32 0.0, %v511
        %513 = vdwg.mxu0
        %v514 = vadd.f32 %v363, %v506
        %v515 = vadd.f32 %v364, %v508
        %v516 = vadd.f32 %v365, %v510
        %v517 = vadd.f32 %v366, %v512
        %518 = vst [vmem:[#allocation2] sm:$0xff] %v514
        %519 = vst [vmem:[#allocation2 + $0x8] sm:$0xff] %v515
        %520 = vst [vmem:[#allocation2 + $0x10] sm:$0xff] %v516
        %521 = vst [vmem:[#allocation2 + $0x18] sm:$0xff] %v517
        // Predicated region
        $region75: #{mla_forward.7} parent=65 // pred_check
          %p522 = pneg %p343
        $region76: #{mla_forward.7} parent=65 // pred_check_branch
          %524 = sbr.rel (%p522) target = $region78
        $region77: #{mla_forward.7} parent=65 // pred_region
          %v525 = vld [vmem:[#allocation2] sm:$0xff]
          %v526 = vld [vmem:[#allocation2 + $0x8] sm:$0xff]
          %v527 = vld [vmem:[#allocation2 + $0x10] sm:$0xff]
          %v528 = vld [vmem:[#allocation2 + $0x18] sm:$0xff]
          %v529 = vpack.c.bf16 %v527, %v525
          %v530 = vpack.c.bf16 %v528, %v526
          %v533 = vunpack.c.l.b16 %v529
          %v534 = vunpack.c.l.b16 %v530
          %v535 = vunpack.c.h.b16 %v529
          %v536 = vunpack.c.h.b16 %v530
          %v537 = vpack.c.b16 %v534, %v533
          %v538 = vpack.c.b16 %v536, %v535
          %541 = vst [vmem:[%s323] sm:$0xff] %v537
          %542 = vst [vmem:[%s323 + $0x8] sm:$0xff] %v538
        $region78: #{mla_forward.7} parent=65 // pred_fallthru
          _
        %s543 = sand.u32 %s125, 1
        %s544 = sand.u32 %s125, 1
        %s545 = smul.addr %s544, 16
        %s546 = scalar_lea.vmem [#allocation4], %s545
        // Predicated region
        $region79: #{mla_forward.7} parent=65 // pred_check
          %p547 = pneg %p135
        $region80: #{mla_forward.7} parent=65 // pred_check_branch
          %549 = sbr.rel (%p547) target = $region82
        $region81: #{mla_forward.7} parent=65 // pred_region
          %s550 = smul.u32 2, %s19
          %s551 = smul.u32 2, %s20
          %s552 = smul.addr %s550, 4
          %s553 = sadd.s32 %s551, %s552
          %s554 = smul.addr %s553, 4
          %s555 = scalar_lea.vmem %s3, %s554
          // Predicated region
          $region83: #{mla_forward.7} parent=81 // pred_check
            _
          $region84: #{mla_forward.7} parent=81 // pred_check_branch
            %557 = sbr.rel (0) target = $region86
          $region85: #{mla_forward.7} parent=81 // pred_region
            // Predicated region
            $region87: #{mla_forward.7} parent=85 // pred_check
              _
            $region88: #{mla_forward.7} parent=85 // pred_check_branch
              %559 = sbr.rel (0) target = $region90
            $region89: #{mla_forward.7} parent=85 // pred_region
              // Predicated region
              $region102: #{mla_forward.7} parent=89 // pred_check
                _
              $region103: #{mla_forward.7} parent=89 // pred_check_branch
                %576 = sbr.rel (0) target = $region105
              $region104: #{mla_forward.7} parent=89 // pred_region
                loop: start=0, step=1, limit=1
                $region106: #{mla_forward.7} parent=104 // loop_pre_header
                  _
                $region107: #{mla_forward.7} parent=104 // loop_header
                  %s578 = sphi 0, %s582
                  %p579 = scmp.ge.s32.totalorder %s578, 1
                  %s583 = sphi %s546, %s546
                  %s584 = sphi %s555, %s555
                $region108: #{mla_forward.7} parent=104 // loop_header_branch
                  %581 = sbr.rel (%p579) target = $region112
                $region109: #{mla_forward.7} parent=104 // loop_body
                  %v585 = vld [vmem:[%s583] sm:$0xff]
                  %586 = vst [vmem:[%s584] sm:$0xff] %v585
                  %v587 = vld [vmem:[%s583 + $0x8] sm:$0xff]
                  %588 = vst [vmem:[%s584 + $0x10] sm:$0xff] %v587
                $region110: #{mla_forward.7} parent=104 // loop_footer
                  %s582 = sadd.s32 1, %s578
                $region111: #{mla_forward.7} parent=104 // loop_footer_branch
                  %577 = sbr.rel target = $region107
                $region112: #{mla_forward.7} parent=104 // loop_exit
                  _
              $region105: #{mla_forward.7} parent=89 // pred_fallthru
                _
              // Predicated region
              $region113: #{mla_forward.7} parent=89 // pred_check
                _
              $region114: #{mla_forward.7} parent=89 // pred_check_branch
                %590 = sbr.rel target = $region116
              $region115: #{mla_forward.7} parent=89 // pred_region
                _
              $region116: #{mla_forward.7} parent=89 // pred_fallthru
                _
            $region90: #{mla_forward.7} parent=85 // pred_fallthru
              _
            // Predicated region
            $region91: #{mla_forward.7} parent=85 // pred_check
              _
            $region92: #{mla_forward.7} parent=85 // pred_check_branch
              %561 = sbr.rel target = $region94
            $region93: #{mla_forward.7} parent=85 // pred_region
              loop: start=0, step=1, limit=1
              $region95: #{mla_forward.7} parent=93 // loop_pre_header
                _
              $region96: #{mla_forward.7} parent=93 // loop_header
                %s564 = sphi 0, %s568
                %p565 = scmp.ge.s32.totalorder %s564, 1
                %s569 = sphi %s546, %s546
                %s570 = sphi %s555, %s555
              $region97: #{mla_forward.7} parent=93 // loop_header_branch
                %567 = sbr.rel (%p565) target = $region101
              $region98: #{mla_forward.7} parent=93 // loop_body
                %v571 = vld [vmem:[%s569] sm:$0xff]
                %572 = vst [vmem:[%s570] sm:$0xff] %v571
                %v573 = vld [vmem:[%s569 + $0x8] sm:$0xff]
                %574 = vst [vmem:[%s570 + $0x10] sm:$0xff] %v573
              $region99: #{mla_forward.7} parent=93 // loop_footer
                %s568 = sadd.s32 1, %s564
              $region100: #{mla_forward.7} parent=93 // loop_footer_branch
                %563 = sbr.rel target = $region96
              $region101: #{mla_forward.7} parent=93 // loop_exit
                _
            $region94: #{mla_forward.7} parent=85 // pred_fallthru
              _
          $region86: #{mla_forward.7} parent=81 // pred_fallthru
            _
          %591 = vnop
        $region82: #{mla_forward.7} parent=65 // pred_fallthru
          _
      $region66: #{mla_forward.7} parent=5 // pred_fallthru
        _
      %p592 = scmp.le.s32.totalorder 2, %s9
      // Predicated region
      $region117: #{mla_forward.7} parent=5 // pred_check
        %p593 = pneg %p592
      $region118: #{mla_forward.7} parent=5 // pred_check_branch
        %595 = sbr.rel (%p593) target = $region120
      $region119: #{mla_forward.7} parent=5 // pred_region
        %s596 = ssub.s32 %s9, 2
        // Predicated region
        $region121: #{mla_forward.7} parent=119 // pred_check
          %p597 = pneg %p141
        $region122: #{mla_forward.7} parent=119 // pred_check_branch
          %599 = sbr.rel (%p597) target = $region124
        $region123: #{mla_forward.7} parent=119 // pred_region
          %s600 = sand.u32 %s126, 1
          %s601 = sand.u32 %s126, 1
          %s602 = smul.addr %s601, 16
          %s603 = scalar_lea.vmem [#allocation4], %s602
        $region124: #{mla_forward.7} parent=119 // pred_fallthru
          _
      $region120: #{mla_forward.7} parent=5 // pred_fallthru
        _
    $region6: #{mla_forward.7} parent=1 // loop_footer
      %s13 = sadd.s32 1, %s9
    $region7: #{mla_forward.7} parent=1 // loop_footer_branch
      %8 = sbr.rel target = $region3
    $region8: #{mla_forward.7} parent=1 // loop_exit
      _

// kernel: mla_forward.9
$region0: #{mla_forward.9}
  #allocation0 [shape = 'u32[]', space=smem, size = 0x4, offset = 0x4, fixed_abs, tag = 'smem constant byte address 0x4 - core index']
  #allocation1 [shape = 'u32[144,128]{1,0:T(1,128)}', space=vmem, size = 0x12000, scoped, tag = 'internal scratch']
  #allocation2 [shape = 'f32[16,256]{1,0:T(8,128)}', space=vmem, size = 0x4000, scoped, tag = 'scratch operand']
  %s0 = inlined_call_operand.vmem [shape: bf16[16,256], index: 0, kind: input, shape index: {}]
  %s1 = inlined_call_operand.vmem [shape: bf16[256,256], index: 1, kind: input, shape index: {}]
  %s2 = inlined_call_operand.vmem [shape: f32[1,256], index: 2, kind: input, shape index: {}]
  %s3 = inlined_call_operand.hbm [shape: f32[16,256], index: 3, kind: output, shape index: {}]
  %s4 = sld [smem:[#allocation0]]
  $region30: #{mla_forward.9} parent=0
    _
  %s6 = ssub.s32 1, %s4
  %s7 = scalar_select 0, %s6, %s4
  $region1: #{mla_forward.9} parent=0
    #allocation3 [shape = 'u8[16384]{0}', space=vmem, size = 0x4000, scoped, tag = 'output window, operand 0, single buffered']
    #allocation4 [shape = 's32[1]{0}', space=sflag, size = 0x4, scoped, tag = 'scoped memory for mla_forward.9']
    %8 = vsyncpa [#allocation4], 0
    // Predicated region
    $region2: #{mla_forward.9} parent=1 // pred_check
      _
    $region3: #{mla_forward.9} parent=1 // pred_check_branch
      %10 = sbr.rel (0) target = $region5
    $region4: #{mla_forward.9} parent=1 // pred_region
      _
    $region5: #{mla_forward.9} parent=1 // pred_fallthru
      _
    // Predicated region
    $region6: #{mla_forward.9} parent=1 // pred_check
      _
    $region7: #{mla_forward.9} parent=1 // pred_check_branch
      %12 = sbr.rel (0) target = $region9
    $region8: #{mla_forward.9} parent=1 // pred_region
      _
    $region9: #{mla_forward.9} parent=1 // pred_fallthru
      _
    // Predicated region
    $region10: #{mla_forward.9} parent=1 // pred_check
      _
    $region11: #{mla_forward.9} parent=1 // pred_check_branch
      %14 = sbr.rel (0) target = $region13
    $region12: #{mla_forward.9} parent=1 // pred_region
      _
    $region13: #{mla_forward.9} parent=1 // pred_fallthru
      _
    %p15 = scmp.eq.s32.totalorder 0, 0
    // Predicated region
    $region14: #{mla_forward.9} parent=1 // pred_check
      %p16 = pneg %p15
    $region15: #{mla_forward.9} parent=1 // pred_check_branch
      %18 = sbr.rel (%p16) target = $region17
    $region16: #{mla_forward.9} parent=1 // pred_region
      %v19 = vld [vmem:[%s2] sm:$0x3]
      %v21 = vlaneseq
      %v22 = vshrl.u32 %v21, 7
      %v23 = vsub.s32 0, %v22
      %v24 = vrot.slane %v19, %v23
      %v25 = vlaneseq
      %v26 = vshrl.u32 %v25, 7
      %v27 = vsub.s32 1, %v26
      %v28 = vrot.slane %v19, %v27
      %31 = vst [vmem:[#allocation2] sm:$0xff] %v24
      %32 = vst [vmem:[#allocation2 + $0x8] sm:$0xff] %v28
      %33 = vst [vmem:[#allocation2 + $0x10] sm:$0xff] %v24
      %34 = vst [vmem:[#allocation2 + $0x18] sm:$0xff] %v28
    $region17: #{mla_forward.9} parent=1 // pred_fallthru
      _
    %v35 = vld [vmem:[#allocation2] sm:$0xff]
    %v36 = vld [vmem:[#allocation2 + $0x8] sm:$0xff]
    %v37 = vld [vmem:[#allocation2 + $0x10] sm:$0xff]
    %v38 = vld [vmem:[#allocation2 + $0x18] sm:$0xff]
    %v39 = vld [vmem:[%s0] sm:$0xff]
    %v40 = vld [vmem:[%s0 + $0x8] sm:$0xff]
    %v41 = vld [vmem:[%s1] sm:$0xff]
    %v42 = vld [vmem:[%s1 + $0x8] sm:$0xff]
    %v43 = vld [vmem:[%s1 + $0x10] sm:$0xff]
    %v44 = vld [vmem:[%s1 + $0x18] sm:$0xff]
    %v45 = vld [vmem:[%s1 + $0x20] sm:$0xff]
    %v46 = vld [vmem:[%s1 + $0x28] sm:$0xff]
    %v47 = vld [vmem:[%s1 + $0x30] sm:$0xff]
    %v48 = vld [vmem:[%s1 + $0x38] sm:$0xff]
    %v49 = vld [vmem:[%s1 + $0x40] sm:$0xff]
    %v50 = vld [vmem:[%s1 + $0x48] sm:$0xff]
    %v51 = vld [vmem:[%s1 + $0x50] sm:$0xff]
    %v52 = vld [vmem:[%s1 + $0x58] sm:$0xff]
    %v53 = vld [vmem:[%s1 + $0x60] sm:$0xff]
    %v54 = vld [vmem:[%s1 + $0x68] sm:$0xff]
    %v55 = vld [vmem:[%s1 + $0x70] sm:$0xff]
    %v56 = vld [vmem:[%s1 + $0x78] sm:$0xff]
    %v57 = vld [vmem:[%s1 + $0x80] sm:$0xff]
    %v58 = vld [vmem:[%s1 + $0x88] sm:$0xff]
    %v59 = vld [vmem:[%s1 + $0x90] sm:$0xff]
    %v60 = vld [vmem:[%s1 + $0x98] sm:$0xff]
    %v61 = vld [vmem:[%s1 + $0xa0] sm:$0xff]
    %v62 = vld [vmem:[%s1 + $0xa8] sm:$0xff]
    %v63 = vld [vmem:[%s1 + $0xb0] sm:$0xff]
    %v64 = vld [vmem:[%s1 + $0xb8] sm:$0xff]
    %v65 = vld [vmem:[%s1 + $0xc0] sm:$0xff]
    %v66 = vld [vmem:[%s1 + $0xc8] sm:$0xff]
    %v67 = vld [vmem:[%s1 + $0xd0] sm:$0xff]
    %v68 = vld [vmem:[%s1 + $0xd8] sm:$0xff]
    %v69 = vld [vmem:[%s1 + $0xe0] sm:$0xff]
    %v70 = vld [vmem:[%s1 + $0xe8] sm:$0xff]
    %v71 = vld [vmem:[%s1 + $0xf0] sm:$0xff]
    %v72 = vld [vmem:[%s1 + $0xf8] sm:$0xff]
    %v75 = vunpack.c.l.b16 %v39
    %v76 = vunpack.c.h.b16 %v39
    %v77 = vunpack.c.l.b16 %v40
    %v78 = vunpack.c.h.b16 %v40
    %v79 = vpack.c.b16 %v77, %v75
    %v80 = vpack.c.b16 %v78, %v76
    %v115 = vunpack.c.l.b16 %v41
    %v116 = vunpack.c.h.b16 %v41
    %v117 = vunpack.c.l.b16 %v42
    %v118 = vunpack.c.h.b16 %v42
    %v119 = vunpack.c.l.b16 %v43
    %v120 = vunpack.c.h.b16 %v43
    %v121 = vunpack.c.l.b16 %v44
    %v122 = vunpack.c.h.b16 %v44
    %v123 = vunpack.c.l.b16 %v45
    %v124 = vunpack.c.h.b16 %v45
    %v125 = vunpack.c.l.b16 %v46
    %v126 = vunpack.c.h.b16 %v46
    %v127 = vunpack.c.l.b16 %v47
    %v128 = vunpack.c.h.b16 %v47
    %v129 = vunpack.c.l.b16 %v48
    %v130 = vunpack.c.h.b16 %v48
    %v131 = vunpack.c.l.b16 %v49
    %v132 = vunpack.c.h.b16 %v49
    %v133 = vunpack.c.l.b16 %v50
    %v134 = vunpack.c.h.b16 %v50
    %v135 = vunpack.c.l.b16 %v51
    %v136 = vunpack.c.h.b16 %v51
    %v137 = vunpack.c.l.b16 %v52
    %v138 = vunpack.c.h.b16 %v52
    %v139 = vunpack.c.l.b16 %v53
    %v140 = vunpack.c.h.b16 %v53
    %v141 = vunpack.c.l.b16 %v54
    %v142 = vunpack.c.h.b16 %v54
    %v143 = vunpack.c.l.b16 %v55
    %v144 = vunpack.c.h.b16 %v55
    %v145 = vunpack.c.l.b16 %v56
    %v146 = vunpack.c.h.b16 %v56
    %v147 = vunpack.c.l.b16 %v57
    %v148 = vunpack.c.h.b16 %v57
    %v149 = vunpack.c.l.b16 %v58
    %v150 = vunpack.c.h.b16 %v58
    %v151 = vunpack.c.l.b16 %v59
    %v152 = vunpack.c.h.b16 %v59
    %v153 = vunpack.c.l.b16 %v60
    %v154 = vunpack.c.h.b16 %v60
    %v155 = vunpack.c.l.b16 %v61
    %v156 = vunpack.c.h.b16 %v61
    %v157 = vunpack.c.l.b16 %v62
    %v158 = vunpack.c.h.b16 %v62
    %v159 = vunpack.c.l.b16 %v63
    %v160 = vunpack.c.h.b16 %v63
    %v161 = vunpack.c.l.b16 %v64
    %v162 = vunpack.c.h.b16 %v64
    %v163 = vunpack.c.l.b16 %v65
    %v164 = vunpack.c.h.b16 %v65
    %v165 = vunpack.c.l.b16 %v66
    %v166 = vunpack.c.h.b16 %v66
    %v167 = vunpack.c.l.b16 %v67
    %v168 = vunpack.c.h.b16 %v67
    %v169 = vunpack.c.l.b16 %v68
    %v170 = vunpack.c.h.b16 %v68
    %v171 = vunpack.c.l.b16 %v69
    %v172 = vunpack.c.h.b16 %v69
    %v173 = vunpack.c.l.b16 %v70
    %v174 = vunpack.c.h.b16 %v70
    %v175 = vunpack.c.l.b16 %v71
    %v176 = vunpack.c.h.b16 %v71
    %v177 = vunpack.c.l.b16 %v72
    %v178 = vunpack.c.h.b16 %v72
    %v179 = vpack.c.b16 %v117, %v115
    %v180 = vpack.c.b16 %v118, %v116
    %v181 = vpack.c.b16 %v121, %v119
    %v182 = vpack.c.b16 %v122, %v120
    %v183 = vpack.c.b16 %v125, %v123
    %v184 = vpack.c.b16 %v126, %v124
    %v185 = vpack.c.b16 %v129, %v127
    %v186 = vpack.c.b16 %v130, %v128
    %v187 = vpack.c.b16 %v133, %v131
    %v188 = vpack.c.b16 %v134, %v132
    %v189 = vpack.c.b16 %v137, %v135
    %v190 = vpack.c.b16 %v138, %v136
    %v191 = vpack.c.b16 %v141, %v139
    %v192 = vpack.c.b16 %v142, %v140
    %v193 = vpack.c.b16 %v145, %v143
    %v194 = vpack.c.b16 %v146, %v144
    %v195 = vpack.c.b16 %v149, %v147
    %v196 = vpack.c.b16 %v150, %v148
    %v197 = vpack.c.b16 %v153, %v151
    %v198 = vpack.c.b16 %v154, %v152
    %v199 = vpack.c.b16 %v157, %v155
    %v200 = vpack.c.b16 %v158, %v156
    %v201 = vpack.c.b16 %v161, %v159
    %v202 = vpack.c.b16 %v162, %v160
    %v203 = vpack.c.b16 %v165, %v163
    %v204 = vpack.c.b16 %v166, %v164
    %v205 = vpack.c.b16 %v169, %v167
    %v206 = vpack.c.b16 %v170, %v168
    %v207 = vpack.c.b16 %v173, %v171
    %v208 = vpack.c.b16 %v174, %v172
    %v209 = vpack.c.b16 %v177, %v175
    %v210 = vpack.c.b16 %v178, %v176
    %243 = vmatprep.subr.bf16.mxu0 %v180
    %244 = vmatpush1.bf16.msra.mxu0 %v179
    %245 = vmatprep.subr.bf16.mxu0 %v182
    %246 = vmatpush1.bf16.msra.mxu0 %v181
    %247 = vmatprep.subr.bf16.mxu0 %v184
    %248 = vmatpush1.bf16.msra.mxu0 %v183
    %249 = vmatprep.subr.bf16.mxu0 %v186
    %250 = vmatpush1.bf16.msra.mxu0 %v185
    %251 = vmatprep.subr.bf16.mxu0 %v188
    %252 = vmatpush1.bf16.msra.mxu0 %v187
    %253 = vmatprep.subr.bf16.mxu0 %v190
    %254 = vmatpush1.bf16.msra.mxu0 %v189
    %255 = vmatprep.subr.bf16.mxu0 %v192
    %256 = vmatpush1.bf16.msra.mxu0 %v191
    %257 = vmatprep.subr.bf16.mxu0 %v194
    %258 = vmatpush1.bf16.msra.mxu0 %v193
    %259 = vmatprep.subr.bf16.mxu0 %v196
    %260 = vmatpush1.bf16.msra.mxu0 %v195
    %261 = vmatprep.subr.bf16.mxu0 %v198
    %262 = vmatpush1.bf16.msra.mxu0 %v197
    %263 = vmatprep.subr.bf16.mxu0 %v200
    %264 = vmatpush1.bf16.msra.mxu0 %v199
    %265 = vmatprep.subr.bf16.mxu0 %v202
    %266 = vmatpush1.bf16.msra.mxu0 %v201
    %267 = vmatprep.subr.bf16.mxu0 %v204
    %268 = vmatpush1.bf16.msra.mxu0 %v203
    %269 = vmatprep.subr.bf16.mxu0 %v206
    %270 = vmatpush1.bf16.msra.mxu0 %v205
    %271 = vmatprep.subr.bf16.mxu0 %v208
    %272 = vmatpush1.bf16.msra.mxu0 %v207
    %273 = vmatprep.subr.bf16.mxu0 %v210
    %274 = vmatpush1.bf16.msra.mxu0 %v209
    %275 = vmatprep.mubr.bf16.mxu0 %v80
    %276 = vmatmul.mubr.bf16.gmra.mrb[0].mxu0 %v79
    %v277 = vpop.f32.mrb[0].mxu0
    %v278 = vadd.f32 0.0, %v277
    %v279 = vpop.f32.mrb[0].mxu0
    %v280 = vadd.f32 0.0, %v279
    %v281 = vpop.f32.mrb[0].mxu0
    %v282 = vadd.f32 0.0, %v281
    %v283 = vpop.f32.mrb[0].mxu0
    %v284 = vadd.f32 0.0, %v283
    %285 = vdwg.mxu0
    %v286 = vadd.f32 %v35, %v278
    %v287 = vadd.f32 %v36, %v280
    %v288 = vadd.f32 %v37, %v282
    %v289 = vadd.f32 %v38, %v284
    %290 = vst [vmem:[#allocation2] sm:$0xff] %v286
    %291 = vst [vmem:[#allocation2 + $0x8] sm:$0xff] %v287
    %292 = vst [vmem:[#allocation2 + $0x10] sm:$0xff] %v288
    %293 = vst [vmem:[#allocation2 + $0x18] sm:$0xff] %v289
    // Predicated region
    $region18: #{mla_forward.9} parent=1 // pred_check
      %p294 = pneg %p15
    $region19: #{mla_forward.9} parent=1 // pred_check_branch
      %296 = sbr.rel (%p294) target = $region21
    $region20: #{mla_forward.9} parent=1 // pred_region
      %v297 = vld [vmem:[#allocation2] sm:$0xff]
      %v298 = vld [vmem:[#allocation2 + $0x8] sm:$0xff]
      %v299 = vld [vmem:[#allocation2 + $0x10] sm:$0xff]
      %v300 = vld [vmem:[#allocation2 + $0x18] sm:$0xff]
      %301 = vst [vmem:[#allocation3] sm:$0xff] %v297
      %302 = vst [vmem:[#allocation3 + $0x8] sm:$0xff] %v298
      %303 = vst [vmem:[#allocation3 + $0x10] sm:$0xff] %v299
      %304 = vst [vmem:[#allocation3 + $0x18] sm:$0xff] %v300
    $region21: #{mla_forward.9} parent=1 // pred_fallthru
      _
    // Predicated region
    $region22: #{mla_forward.9} parent=1 // pred_check
      _
    $region23: #{mla_forward.9} parent=1 // pred_check_branch
      %306 = sbr.rel (0) target = $region25
    $region24: #{mla_forward.9} parent=1 // pred_region
      %s308 = ssub.s32 512, 512
      %309 = vsyncadd [#allocation4], %s308
      %s310 = sshll.u32 [#allocation3], 4
      %s311 = int_to_ptr.vmem [resolvable:$true] %s310
      %316 = dma.vmem_to_hbm [thread:$0]  %s311, 512, %s3, [#allocation4], 256, 256, 16
    $region25: #{mla_forward.9} parent=1 // pred_fallthru
      _
    // Predicated region
    $region26: #{mla_forward.9} parent=1 // pred_check
      _
    $region27: #{mla_forward.9} parent=1 // pred_check_branch
      %318 = sbr.rel (0) target = $region29
    $region28: #{mla_forward.9} parent=1 // pred_region
      %319 = dma.done [#allocation4], 512
    $region29: #{mla_forward.9} parent=1 // pred_fallthru
      _
    %320 = vsyncpa [#allocation4], 1

// kernel: mla_forward.8
$region0: #{mla_forward.8}
  #allocation0 [shape = 'u32[]', space=smem, size = 0x4, offset = 0x4, fixed_abs, tag = 'smem constant byte address 0x4 - core index']
  #allocation1 [shape = 'u32[144,128]{1,0:T(1,128)}', space=vmem, size = 0x12000, scoped, tag = 'internal scratch']
  #allocation2 [shape = 'f32[8,1]{1,0:T(8,128)}', space=vmem, size = 0x1000, scoped, tag = 'scratch operand']
  #allocation3 [shape = 'f32[8,1]{1,0:T(8,128)}', space=vmem, size = 0x1000, scoped, tag = 'scratch operand']
  #allocation4 [shape = 'f32[8,128]{1,0:T(8,128)}', space=vmem, size = 0x1000, scoped, tag = 'scratch operand']
  %s0 = inlined_call_operand.vmem [shape: bf16[16,512], index: 0, kind: input, shape index: {}]
  %s1 = inlined_call_operand.vmem [shape: bf16[16,256], index: 1, kind: input, shape index: {}]
  %s2 = inlined_call_operand.vmem [shape: bf16[16,512], index: 2, kind: input, shape index: {}, may-alias: {2,4}]
  %s3 = inlined_call_operand.vmem [shape: bf16[16,128], index: 3, kind: input, shape index: {}]
  %s4 = inlined_call_operand.vmem [shape: bf16[16,512], index: 4, kind: input, shape index: {}, may-alias: {2,4}]
  %s5 = inlined_call_operand.vmem [shape: bf16[16,256], index: 5, kind: output, shape index: {}]
  %s6 = sld [smem:[#allocation0]]
  $region61: #{mla_forward.8} parent=0
    _
  %s8 = ssub.s32 1, %s6
  %s9 = scalar_select 0, %s8, %s6
  loop: start=0, step=1, limit=6
  $region2: #{mla_forward.8} parent=0 // loop_pre_header
    _
  $region3: #{mla_forward.8} parent=0 // loop_header
    %s11 = sphi 0, %s15
    %p12 = scmp.ge.s32.totalorder %s11, 6
    %s18 = sphi 0, %s44
    %s19 = sphi 0, %s40
    %s20 = sphi 0, %s36
    %s21 = sphi 0, %s32
    %s22 = sphi 0, %s18
    %s23 = sphi 0, %s19
    %s24 = sphi 0, %s20
    %s25 = sphi 0, %s21
    %s26 = sphi 0, %s22
    %s27 = sphi 0, %s23
    %s28 = sphi 0, %s24
    %s29 = sphi 0, %s25
    %s51 = sphi 0, %s53
    %s54 = sphi 0, %s51
    %s55 = sphi 0, %s54
    %s71 = sphi 0, %s55
    %s81 = sphi 0, %s83
    %s84 = sphi 0, %s81
    %s85 = sphi 0, %s84
    %s101 = sphi 0, %s85
    %s111 = sphi 0, %s113
    %s114 = sphi 0, %s111
    %s115 = sphi 0, %s114
    %s131 = sphi 0, %s115
    %s139 = sphi 0, %s141
    %s142 = sphi 0, %s139
    %s143 = sphi 0, %s142
    %s159 = sphi 0, %s143
    %s171 = sphi 0, %s173
    %s174 = sphi 0, %s171
    %s175 = sphi 0, %s174
    %s191 = sphi 0, %s175
    %s201 = sphi 0, %s203
    %s204 = sphi 0, %s201
    %s205 = sphi 0, %s204
    %s221 = sphi 0, %s205
  $region4: #{mla_forward.8} parent=0 // loop_header_branch
    %14 = sbr.rel (%p12) target = $region8
  $region5: #{mla_forward.8} parent=0 // loop_body
    %s16 = ssub.s32 %s11, 1
    %s17 = ssub.s32 %s11, 2
    %s30 = sadd.s32 1, %s21
    %p31 = scmp.ge.s32.totalorder %s30, 1
    %s32 = scalar_select %p31, 0, %s30
    %s33 = sadd.s32 1, %s20
    %s34 = scalar_select %p31, %s33, %s20
    %p35 = scmp.ge.s32.totalorder %s34, 1
    %s36 = scalar_select %p35, 0, %s34
    %s37 = sadd.s32 1, %s19
    %s38 = scalar_select %p35, %s37, %s19
    %p39 = scmp.ge.s32.totalorder %s38, 2
    %s40 = scalar_select %p39, 0, %s38
    %s41 = sadd.s32 1, %s18
    %s42 = scalar_select %p39, %s41, %s18
    %p43 = scmp.ge.s32.totalorder %s42, 2
    %s44 = scalar_select %p43, 0, %s42
    %s45 = sadd.s32 %s18, %s20
    %s46 = sadd.s32 %s44, %s36
    %s47 = ssub.s32 %s45, %s46
    %s48 = ssub.s32 %s19, %s40
    %s49 = sor.u32 %s47, %s48
    %p50 = scmp.eq.s32.totalorder %s49, 0
    %s52 = sadd.s32 %s51, 1
    %s53 = scalar_select %p50, %s51, %s52
    %p56 = pneg %p50
    %p57 = scmp.eq.s32.totalorder %s11, 3
    %p58 = por %p56, %p57
    %p59 = scmp.ne.s32.totalorder %s51, %s54
    %p60 = scmp.eq.s32.totalorder %s11, 0
    %p61 = por %p59, %p60
    %p62 = scmp.ne.s32.totalorder %s51, %s54
    %p63 = scmp.eq.s32.totalorder %s16, 3
    %p64 = por %p62, %p63
    %p65 = scmp.ne.s32.totalorder %s54, %s55
    %p66 = scmp.eq.s32.totalorder %s16, 0
    %p67 = por %p65, %p66
    %p68 = scmp.ne.s32.totalorder %s54, %s55
    %p69 = scmp.eq.s32.totalorder %s17, 3
    %p70 = por %p68, %p69
    %p72 = scmp.ne.s32.totalorder %s55, %s71
    %p73 = scmp.eq.s32.totalorder %s17, 0
    %p74 = por %p72, %p73
    %s75 = sadd.s32 %s18, %s20
    %s76 = sadd.s32 %s44, %s36
    %s77 = ssub.s32 %s75, %s76
    %s78 = ssub.s32 %s19, %s40
    %s79 = sor.u32 %s77, %s78
    %p80 = scmp.eq.s32.totalorder %s79, 0
    %s82 = sadd.s32 %s81, 1
    %s83 = scalar_select %p80, %s81, %s82
    %p86 = pneg %p80
    %p87 = scmp.eq.s32.totalorder %s11, 3
    %p88 = por %p86, %p87
    %p89 = scmp.ne.s32.totalorder %s81, %s84
    %p90 = scmp.eq.s32.totalorder %s11, 0
    %p91 = por %p89, %p90
    %p92 = scmp.ne.s32.totalorder %s81, %s84
    %p93 = scmp.eq.s32.totalorder %s16, 3
    %p94 = por %p92, %p93
    %p95 = scmp.ne.s32.totalorder %s84, %s85
    %p96 = scmp.eq.s32.totalorder %s16, 0
    %p97 = por %p95, %p96
    %p98 = scmp.ne.s32.totalorder %s84, %s85
    %p99 = scmp.eq.s32.totalorder %s17, 3
    %p100 = por %p98, %p99
    %p102 = scmp.ne.s32.totalorder %s85, %s101
    %p103 = scmp.eq.s32.totalorder %s17, 0
    %p104 = por %p102, %p103
    %s105 = sadd.s32 %s18, %s21
    %s106 = sadd.s32 %s44, %s32
    %s107 = ssub.s32 %s105, %s106
    %s108 = ssub.s32 %s19, %s40
    %s109 = sor.u32 %s107, %s108
    %p110 = scmp.eq.s32.totalorder %s109, 0
    %s112 = sadd.s32 %s111, 1
    %s113 = scalar_select %p110, %s111, %s112
    %p116 = pneg %p110
    %p117 = scmp.eq.s32.totalorder %s11, 3
    %p118 = por %p116, %p117
    %p119 = scmp.ne.s32.totalorder %s111, %s114
    %p120 = scmp.eq.s32.totalorder %s11, 0
    %p121 = por %p119, %p120
    %p122 = scmp.ne.s32.totalorder %s111, %s114
    %p123 = scmp.eq.s32.totalorder %s16, 3
    %p124 = por %p122, %p123
    %p125 = scmp.ne.s32.totalorder %s114, %s115
    %p126 = scmp.eq.s32.totalorder %s16, 0
    %p127 = por %p125, %p126
    %p128 = scmp.ne.s32.totalorder %s114, %s115
    %p129 = scmp.eq.s32.totalorder %s17, 3
    %p130 = por %p128, %p129
    %p132 = scmp.ne.s32.totalorder %s115, %s131
    %p133 = scmp.eq.s32.totalorder %s17, 0
    %p134 = por %p132, %p133
    %s135 = sadd.s32 %s18, %s21
    %s136 = sadd.s32 %s44, %s32
    %s137 = ssub.s32 %s135, %s136
    %p138 = scmp.eq.s32.totalorder %s137, 0
    %s140 = sadd.s32 %s139, 1
    %s141 = scalar_select %p138, %s139, %s140
    %p144 = pneg %p138
    %p145 = scmp.eq.s32.totalorder %s11, 3
    %p146 = por %p144, %p145
    %p147 = scmp.ne.s32.totalorder %s139, %s142
    %p148 = scmp.eq.s32.totalorder %s11, 0
    %p149 = por %p147, %p148
    %p150 = scmp.ne.s32.totalorder %s139, %s142
    %p151 = scmp.eq.s32.totalorder %s16, 3
    %p152 = por %p150, %p151
    %p153 = scmp.ne.s32.totalorder %s142, %s143
    %p154 = scmp.eq.s32.totalorder %s16, 0
    %p155 = por %p153, %p154
    %p156 = scmp.ne.s32.totalorder %s142, %s143
    %p157 = scmp.eq.s32.totalorder %s17, 3
    %p158 = por %p156, %p157
    %p160 = scmp.ne.s32.totalorder %s143, %s159
    %p161 = scmp.eq.s32.totalorder %s17, 0
    %p162 = por %p160, %p161
    %s163 = sadd.s32 %s18, %s21
    %s164 = sadd.s32 %s19, 2
    %s165 = sadd.s32 %s44, %s32
    %s166 = sadd.s32 %s40, 2
    %s167 = ssub.s32 %s163, %s165
    %s168 = ssub.s32 %s164, %s166
    %s169 = sor.u32 %s167, %s168
    %p170 = scmp.eq.s32.totalorder %s169, 0
    %s172 = sadd.s32 %s171, 1
    %s173 = scalar_select %p170, %s171, %s172
    %p176 = pneg %p170
    %p177 = scmp.eq.s32.totalorder %s11, 3
    %p178 = por %p176, %p177
    %p179 = scmp.ne.s32.totalorder %s171, %s174
    %p180 = scmp.eq.s32.totalorder %s11, 0
    %p181 = por %p179, %p180
    %p182 = scmp.ne.s32.totalorder %s171, %s174
    %p183 = scmp.eq.s32.totalorder %s16, 3
    %p184 = por %p182, %p183
    %p185 = scmp.ne.s32.totalorder %s174, %s175
    %p186 = scmp.eq.s32.totalorder %s16, 0
    %p187 = por %p185, %p186
    %p188 = scmp.ne.s32.totalorder %s174, %s175
    %p189 = scmp.eq.s32.totalorder %s17, 3
    %p190 = por %p188, %p189
    %p192 = scmp.ne.s32.totalorder %s175, %s191
    %p193 = scmp.eq.s32.totalorder %s17, 0
    %p194 = por %p192, %p193
    %s195 = sadd.s32 %s18, %s20
    %s196 = sadd.s32 %s44, %s36
    %s197 = ssub.s32 %s195, %s196
    %s198 = ssub.s32 %s19, %s40
    %s199 = sor.u32 %s197, %s198
    %p200 = scmp.eq.s32.totalorder %s199, 0
    %s202 = sadd.s32 %s201, 1
    %s203 = scalar_select %p200, %s201, %s202
    %p206 = pneg %p200
    %p207 = scmp.eq.s32.totalorder %s11, 3
    %p208 = por %p206, %p207
    %p209 = scmp.ne.s32.totalorder %s201, %s204
    %p210 = scmp.eq.s32.totalorder %s11, 0
    %p211 = por %p209, %p210
    %p212 = scmp.ne.s32.totalorder %s201, %s204
    %p213 = scmp.eq.s32.totalorder %s16, 3
    %p214 = por %p212, %p213
    %p215 = scmp.ne.s32.totalorder %s204, %s205
    %p216 = scmp.eq.s32.totalorder %s16, 0
    %p217 = por %p215, %p216
    %p218 = scmp.ne.s32.totalorder %s204, %s205
    %p219 = scmp.eq.s32.totalorder %s17, 3
    %p220 = por %p218, %p219
    %p222 = scmp.ne.s32.totalorder %s205, %s221
    %p223 = scmp.eq.s32.totalorder %s17, 0
    %p224 = por %p222, %p223
    %p225 = scmp.le.s32.totalorder 1, %s11
    %p226 = scmp.lt.s32.totalorder %s11, 5
    %p227 = pnand %p225, %p226
    %p228 = pneg %p227
    // Predicated region
    $region9: #{mla_forward.8} parent=5 // pred_check
      _
    $region10: #{mla_forward.8} parent=5 // pred_check_branch
      %230 = sbr.rel (%p227) target = $region12
    $region11: #{mla_forward.8} parent=5 // pred_region
      %s231 = ssub.s32 %s11, 1
    $region12: #{mla_forward.8} parent=5 // pred_fallthru
      _
    %p232 = scmp.lt.s32.totalorder %s11, 4
    // Predicated region
    $region13: #{mla_forward.8} parent=5 // pred_check
      %p233 = pneg %p232
    $region14: #{mla_forward.8} parent=5 // pred_check_branch
      %235 = sbr.rel (%p233) target = $region16
    $region15: #{mla_forward.8} parent=5 // pred_region
      // Predicated region
      $region17: #{mla_forward.8} parent=15 // pred_check
        %p236 = pneg %p61
      $region18: #{mla_forward.8} parent=15 // pred_check_branch
        %238 = sbr.rel (%p236) target = $region20
      $region19: #{mla_forward.8} parent=15 // pred_region
        %s239 = sadd.s32 %s18, %s20
        %p240 = scmp.lt.s32.totalorder %s239, 1
        %s241 = scalar_select %p240, %s239, 1
        %p242 = scmp.lt.s32.totalorder %s19, 3
        %s243 = scalar_select %p242, %s19, 3
        %s244 = smul.addr %s241, 4
        %s245 = sadd.s32 %s243, %s244
        %s246 = smul.addr %s245, 4
        %s247 = scalar_lea.vmem %s0, %s246
        %s248 = sadd.s32 %s18, %s20
      $region20: #{mla_forward.8} parent=15 // pred_fallthru
        _
      // Predicated region
      $region21: #{mla_forward.8} parent=15 // pred_check
        %p249 = pneg %p91
      $region22: #{mla_forward.8} parent=15 // pred_check_branch
        %251 = sbr.rel (%p249) target = $region24
      $region23: #{mla_forward.8} parent=15 // pred_region
        %s252 = sadd.s32 %s18, %s20
        %p253 = scmp.lt.s32.totalorder %s252, 1
        %s254 = scalar_select %p253, %s252, 1
        %p255 = scmp.lt.s32.totalorder %s19, 1
        %s256 = scalar_select %p255, %s19, 1
        %s257 = smul.addr %s254, 2
        %s258 = sadd.s32 %s256, %s257
        %s259 = smul.addr %s258, 4
        %s260 = scalar_lea.vmem %s1, %s259
        %s261 = sadd.s32 %s18, %s20
      $region24: #{mla_forward.8} parent=15 // pred_fallthru
        _
      // Predicated region
      $region25: #{mla_forward.8} parent=15 // pred_check
        %p262 = pneg %p121
      $region26: #{mla_forward.8} parent=15 // pred_check_branch
        %264 = sbr.rel (%p262) target = $region28
      $region27: #{mla_forward.8} parent=15 // pred_region
        %s265 = sadd.s32 %s18, %s21
        %p266 = scmp.lt.s32.totalorder %s265, 1
        %s267 = scalar_select %p266, %s265, 1
        %p268 = scmp.lt.s32.totalorder %s19, 3
        %s269 = scalar_select %p268, %s19, 3
        %s270 = smul.addr %s267, 4
        %s271 = sadd.s32 %s269, %s270
        %s272 = smul.addr %s271, 4
        %s273 = scalar_lea.vmem %s2, %s272
        %s274 = sadd.s32 %s18, %s21
      $region28: #{mla_forward.8} parent=15 // pred_fallthru
        _
      // Predicated region
      $region29: #{mla_forward.8} parent=15 // pred_check
        %p275 = pneg %p149
      $region30: #{mla_forward.8} parent=15 // pred_check_branch
        %277 = sbr.rel (%p275) target = $region32
      $region31: #{mla_forward.8} parent=15 // pred_region
        %s278 = sadd.s32 %s18, %s21
        %p279 = scmp.lt.s32.totalorder %s278, 1
        %s280 = scalar_select %p279, %s278, 1
        %s281 = smul.addr %s280, 4
        %s282 = scalar_lea.vmem %s3, %s281
        %s283 = sadd.s32 %s18, %s21
      $region32: #{mla_forward.8} parent=15 // pred_fallthru
        _
      // Predicated region
      $region33: #{mla_forward.8} parent=15 // pred_check
        %p284 = pneg %p181
      $region34: #{mla_forward.8} parent=15 // pred_check_branch
        %286 = sbr.rel (%p284) target = $region36
      $region35: #{mla_forward.8} parent=15 // pred_region
        %s287 = sadd.s32 %s18, %s21
        %s288 = sadd.s32 %s19, 2
        %p289 = scmp.lt.s32.totalorder %s287, 1
        %s290 = scalar_select %p289, %s287, 1
        %p291 = scmp.lt.s32.totalorder %s288, 3
        %s292 = scalar_select %p291, %s288, 3
        %s293 = smul.addr %s290, 4
        %s294 = sadd.s32 %s292, %s293
        %s295 = smul.addr %s294, 4
        %s296 = scalar_lea.vmem %s4, %s295
        %s297 = sadd.s32 %s18, %s21
        %s298 = sadd.s32 %s19, 2
      $region36: #{mla_forward.8} parent=15 // pred_fallthru
        _
    $region16: #{mla_forward.8} parent=5 // pred_fallthru
      _
    %p299 = scmp.le.s32.totalorder 1, %s11
    %p300 = scmp.lt.s32.totalorder %s11, 5
    %p301 = pnand %p299, %p300
    %p302 = pneg %p301
    // Predicated region
    $region37: #{mla_forward.8} parent=5 // pred_check
      _
    $region38: #{mla_forward.8} parent=5 // pred_check_branch
      %304 = sbr.rel (%p301) target = $region40
    $region39: #{mla_forward.8} parent=5 // pred_region
      %s305 = ssub.s32 %s11, 1
      %s306 = sadd.s32 %s22, %s24
      %p307 = scmp.lt.s32.totalorder %s306, 1
      %s308 = scalar_select %p307, %s306, 1
      %p309 = scmp.lt.s32.totalorder %s23, 3
      %s310 = scalar_select %p309, %s23, 3
      %s311 = smul.addr %s308, 4
      %s312 = sadd.s32 %s310, %s311
      %s313 = smul.addr %s312, 4
      %s314 = scalar_lea.vmem %s0, %s313
      %p315 = pneg %p67
      %p316 = pneg %p64
      %s317 = sadd.s32 %s22, %s24
      %p318 = scmp.lt.s32.totalorder %s317, 1
      %s319 = scalar_select %p318, %s317, 1
      %p320 = scmp.lt.s32.totalorder %s23, 1
      %s321 = scalar_select %p320, %s23, 1
      %s322 = smul.addr %s319, 2
      %s323 = sadd.s32 %s321, %s322
      %s324 = smul.addr %s323, 4
      %s325 = scalar_lea.vmem %s1, %s324
      %p326 = pneg %p97
      %p327 = pneg %p94
      %s328 = sadd.s32 %s22, %s25
      %p329 = scmp.lt.s32.totalorder %s328, 1
      %s330 = scalar_select %p329, %s328, 1
      %p331 = scmp.lt.s32.totalorder %s23, 3
      %s332 = scalar_select %p331, %s23, 3
      %s333 = smul.addr %s330, 4
      %s334 = sadd.s32 %s332, %s333
      %s335 = smul.addr %s334, 4
      %s336 = scalar_lea.vmem %s2, %s335
      %p337 = pneg %p127
      %p338 = pneg %p124
      %s339 = sadd.s32 %s22, %s25
      %p340 = scmp.lt.s32.totalorder %s339, 1
      %s341 = scalar_select %p340, %s339, 1
      %s342 = smul.addr %s341, 4
      %s343 = scalar_lea.vmem %s3, %s342
      %p344 = pneg %p155
      %p345 = pneg %p152
      %s346 = sadd.s32 %s22, %s25
      %s347 = sadd.s32 %s23, 2
      %p348 = scmp.lt.s32.totalorder %s346, 1
      %s349 = scalar_select %p348, %s346, 1
      %p350 = scmp.lt.s32.totalorder %s347, 3
      %s351 = scalar_select %p350, %s347, 3
      %s352 = smul.addr %s349, 4
      %s353 = sadd.s32 %s351, %s352
      %s354 = smul.addr %s353, 4
      %s355 = scalar_lea.vmem %s4, %s354
      %p356 = pneg %p187
      %p357 = pneg %p184
      %p358 = pneg %p217
      %p359 = pneg %p214
      %s360 = sadd.s32 %s22, %s24
      %p361 = scmp.lt.s32.totalorder %s360, 1
      %s362 = scalar_select %p361, %s360, 1
      %p363 = scmp.lt.s32.totalorder %s23, 1
      %s364 = scalar_select %p363, %s23, 1
      %s365 = smul.addr %s362, 2
      %s366 = sadd.s32 %s364, %s365
      %s367 = smul.addr %s366, 4
      %s368 = scalar_lea.vmem %s5, %s367
      %s369 = sadd.s32 %s22, %s24
      %p370 = scmp.lt.s32.totalorder %s369, 1
      %s371 = scalar_select %p370, %s369, 1
      %p372 = scmp.lt.s32.totalorder %s23, 3
      %s373 = scalar_select %p372, %s23, 3
      %s374 = smul.addr %s371, 4
      %s375 = sadd.s32 %s373, %s374
      %s376 = smul.addr %s375, 4
      %s377 = scalar_lea.vmem %s0, %s376
      %s378 = sadd.s32 %s22, %s24
      %s379 = sadd.s32 %s22, %s24
      %p380 = scmp.lt.s32.totalorder %s379, 1
      %s381 = scalar_select %p380, %s379, 1
      %p382 = scmp.lt.s32.totalorder %s23, 1
      %s383 = scalar_select %p382, %s23, 1
      %s384 = smul.addr %s381, 2
      %s385 = sadd.s32 %s383, %s384
      %s386 = smul.addr %s385, 4
      %s387 = scalar_lea.vmem %s1, %s386
      %s388 = sadd.s32 %s22, %s24
      %s389 = sadd.s32 %s22, %s25
      %p390 = scmp.lt.s32.totalorder %s389, 1
      %s391 = scalar_select %p390, %s389, 1
      %p392 = scmp.lt.s32.totalorder %s23, 3
      %s393 = scalar_select %p392, %s23, 3
      %s394 = smul.addr %s391, 4
      %s395 = sadd.s32 %s393, %s394
      %s396 = smul.addr %s395, 4
      %s397 = scalar_lea.vmem %s2, %s396
      %s398 = sadd.s32 %s22, %s25
      %s399 = sadd.s32 %s22, %s25
      %p400 = scmp.lt.s32.totalorder %s399, 1
      %s401 = scalar_select %p400, %s399, 1
      %s402 = smul.addr %s401, 4
      %s403 = scalar_lea.vmem %s3, %s402
      %s404 = sadd.s32 %s22, %s25
      %s405 = sadd.s32 %s22, %s25
      %s406 = sadd.s32 %s23, 2
      %p407 = scmp.lt.s32.totalorder %s405, 1
      %s408 = scalar_select %p407, %s405, 1
      %p409 = scmp.lt.s32.totalorder %s406, 3
      %s410 = scalar_select %p409, %s406, 3
      %s411 = smul.addr %s408, 4
      %s412 = sadd.s32 %s410, %s411
      %s413 = smul.addr %s412, 4
      %s414 = scalar_lea.vmem %s4, %s413
      %s415 = sadd.s32 %s22, %s25
      %s416 = sadd.s32 %s23, 2
      %s417 = sadd.s32 %s22, %s24
      %p418 = scmp.lt.s32.totalorder %s417, 1
      %s419 = scalar_select %p418, %s417, 1
      %p420 = scmp.lt.s32.totalorder %s23, 1
      %s421 = scalar_select %p420, %s23, 1
      %s422 = smul.addr %s419, 2
      %s423 = sadd.s32 %s421, %s422
      %s424 = smul.addr %s423, 4
      %s425 = scalar_lea.vmem %s5, %s424
      %s426 = sadd.s32 %s22, %s24
      %p428 = scmp.eq.s32.totalorder %s25, 0
      // Predicated region
      $region41: #{mla_forward.8} parent=39 // pred_check
        %p429 = pneg %p428
      $region42: #{mla_forward.8} parent=39 // pred_check_branch
        %431 = sbr.rel (%p429) target = $region44
      $region43: #{mla_forward.8} parent=39 // pred_region
        %vm432 = vcmask 7168
        %433 = vst.msk [vmem:[#allocation2] sm:$0xff] %vm432, -inf
        %434 = vst.msk [vmem:[#allocation3] sm:$0xff] %vm432, 0.0
        %435 = vst [vmem:[#allocation4] sm:$0xff] 0.0
      $region44: #{mla_forward.8} parent=39 // pred_fallthru
        _
      %v436 = vld [vmem:[%s377] sm:$0xf]
      %v437 = vld [vmem:[%s397] sm:$0xf]
      %v438 = vld [vmem:[%s387] sm:$0xf]
      %v439 = vld [vmem:[%s403] sm:$0xf]
      %440 = vmatprep.subr.bf16.mxu0 0
      %441 = vmatpush1.bf16.xpose.msra.mxu0 %v439
      %442 = vmatprep.subr.bf16.mxu0 0
      %443 = vmatpush1.bf16.xpose.msra.mxu0 0
      %444 = vmatprep.subr.bf16.mxu0 0
      %445 = vmatpush1.bf16.xpose.msra.mxu0 0
      %446 = vmatprep.subr.bf16.mxu0 0
      %447 = vmatpush1.bf16.xpose.msra.mxu0 0
      %448 = vmatprep.subr.bf16.mxu0 0
      %449 = vmatpush1.bf16.xpose.msra.mxu0 0
      %450 = vmatprep.subr.bf16.mxu0 0
      %451 = vmatpush1.bf16.xpose.msra.mxu0 0
      %452 = vmatprep.subr.bf16.mxu0 0
      %453 = vmatpush1.bf16.xpose.msra.mxu0 0
      %454 = vmatprep.subr.bf16.mxu0 0
      %455 = vmatpush1.bf16.xpose.msra.mxu0 0
      %456 = vmatprep.subr.bf16.mxu0 0
      %457 = vmatpush1.bf16.xpose.msra.mxu0 0
      %458 = vmatprep.subr.bf16.mxu0 0
      %459 = vmatpush1.bf16.xpose.msra.mxu0 0
      %460 = vmatprep.subr.bf16.mxu0 0
      %461 = vmatpush1.bf16.xpose.msra.mxu0 0
      %462 = vmatprep.subr.bf16.mxu0 0
      %463 = vmatpush1.bf16.xpose.msra.mxu0 0
      %464 = vmatprep.subr.bf16.mxu0 0
      %465 = vmatpush1.bf16.xpose.msra.mxu0 0
      %466 = vmatprep.subr.bf16.mxu0 0
      %467 = vmatpush1.bf16.xpose.msra.mxu0 0
      %468 = vmatprep.subr.bf16.mxu0 0
      %469 = vmatpush1.bf16.xpose.msra.mxu0 0
      %470 = vmatprep.subr.bf16.mxu0 0
      %471 = vmatpush1.bf16.xpose.msra.mxu0 0
      %472 = vmatprep.mubr.bf16.mxu0 0
      %473 = vmatmul.mubr.bf16.gmra.mrb[0].mxu0 %v438
      %v474 = vpop.f32.mrb[0].mxu0
      %v475 = vadd.f32 0.0, %v474
      %v476 = vpop.f32.mrb[0].mxu0
      %v477 = vpop.f32.mrb[0].mxu0
      %v478 = vpop.f32.mrb[0].mxu0
      %479 = vdwg.mxu0
      %480 = vmatprep.subr.bf16.mxu0 0
      %481 = vmatpush1.bf16.xpose.msra.mxu0 %v437
      %482 = vmatprep.subr.bf16.mxu0 0
      %483 = vmatpush1.bf16.xpose.msra.mxu0 0
      %484 = vmatprep.subr.bf16.mxu0 0
      %485 = vmatpush1.bf16.xpose.msra.mxu0 0
      %486 = vmatprep.subr.bf16.mxu0 0
      %487 = vmatpush1.bf16.xpose.msra.mxu0 0
      %488 = vmatprep.subr.bf16.mxu0 0
      %489 = vmatpush1.bf16.xpose.msra.mxu0 0
      %490 = vmatprep.subr.bf16.mxu0 0
      %491 = vmatpush1.bf16.xpose.msra.mxu0 0
      %492 = vmatprep.subr.bf16.mxu0 0
      %493 = vmatpush1.bf16.xpose.msra.mxu0 0
      %494 = vmatprep.subr.bf16.mxu0 0
      %495 = vmatpush1.bf16.xpose.msra.mxu0 0
      %496 = vmatprep.subr.bf16.mxu0 0
      %497 = vmatpush1.bf16.xpose.msra.mxu0 0
      %498 = vmatprep.subr.bf16.mxu0 0
      %499 = vmatpush1.bf16.xpose.msra.mxu0 0
      %500 = vmatprep.subr.bf16.mxu0 0
      %501 = vmatpush1.bf16.xpose.msra.mxu0 0
      %502 = vmatprep.subr.bf16.mxu0 0
      %503 = vmatpush1.bf16.xpose.msra.mxu0 0
      %504 = vmatprep.subr.bf16.mxu0 0
      %505 = vmatpush1.bf16.xpose.msra.mxu0 0
      %506 = vmatprep.subr.bf16.mxu0 0
      %507 = vmatpush1.bf16.xpose.msra.mxu0 0
      %508 = vmatprep.subr.bf16.mxu0 0
      %509 = vmatpush1.bf16.xpose.msra.mxu0 0
      %510 = vmatprep.subr.bf16.mxu0 0
      %511 = vmatpush1.bf16.xpose.msra.mxu0 0
      %512 = vmatprep.mubr.bf16.mxu0 0
      %513 = vmatmul.mubr.bf16.gmra.mrb[0].mxu0 %v436
      %v514 = vpop.f32.mrb[0].mxu0
      %v515 = vadd.f32 %v475, %v514
      %v516 = vpop.f32.mrb[0].mxu0
      %v517 = vpop.f32.mrb[0].mxu0
      %v518 = vpop.f32.mrb[0].mxu0
      %519 = vdwg.mxu0
      %v520 = vld [vmem:[#allocation2] sm:$0xff]
      %vm521 = vcmask 64512
      %v522 = vsel %vm521, %v515, -inf
      %523 = vmax.xlane.f32.xlu0 %v522
      %v524 = vpop.xlane.xlu0 %523
      %v525 = vmax.f32 %v520, %v524
      %v526 = vsub.f32 %v520, %v525
      %v527 = vmul.f32 %v526, 1.442695
      %v528 = vpow.pop %v527
      %530 = vset.pattern.permute.xlu0 0
      %531 = vperm.xlu0 %530, %v525
      %v532 = vpop.permute.xlu0 %531
      %v534 = vsub.f32 %v515, %v532
      %v535 = vmul.f32 %v534, 1.442695
      %v536 = vpow.pop %v535
      %v537 = vld [vmem:[#allocation3] sm:$0xff]
      %v538 = vmul.f32 %v528, %v537
      %v539 = vsel %vm521, %v536, 0.0
      %540 = vadd.xlane.f32.xlu0 %v539
      %v541 = vpop.xlane.xlu0 %540
      %v542 = vadd.f32 %v538, %v541
      %vm543 = vcmask 7168
      %544 = vst.msk [vmem:[#allocation3] sm:$0xff] %vm543, %v542
      %v545 = vld [vmem:[#allocation4] sm:$0xff]
      %547 = vset.pattern.permute.xlu0 0
      %548 = vperm.xlu0 %547, %v528
      %v549 = vpop.permute.xlu0 %548
      %v551 = vmul.f32 %v549, %v545
      %v552 = vpack.c.bf16 %v536, %v536
      %v553 = vld [vmem:[%s414] sm:$0xf]
      %v555 = vsel %vm521, %v552, 0
      %vm557 = vcmask 1043456
      %v559 = vsel %vm557, %v553, 0
      %561 = vmatprep.subr.bf16.mxu0 0
      %562 = vmatpush1.bf16.msra.mxu0 %v559
      %563 = vmatprep.subr.bf16.mxu0 0
      %564 = vmatpush1.bf16.msra.mxu0 0
      %565 = vmatprep.subr.bf16.mxu0 0
      %566 = vmatpush1.bf16.msra.mxu0 0
      %567 = vmatprep.subr.bf16.mxu0 0
      %568 = vmatpush1.bf16.msra.mxu0 0
      %569 = vmatprep.subr.bf16.mxu0 0
      %570 = vmatpush1.bf16.msra.mxu0 0
      %571 = vmatprep.subr.bf16.mxu0 0
      %572 = vmatpush1.bf16.msra.mxu0 0
      %573 = vmatprep.subr.bf16.mxu0 0
      %574 = vmatpush1.bf16.msra.mxu0 0
      %575 = vmatprep.subr.bf16.mxu0 0
      %576 = vmatpush1.bf16.msra.mxu0 0
      %577 = vmatprep.subr.bf16.mxu0 0
      %578 = vmatpush1.bf16.msra.mxu0 0
      %579 = vmatprep.subr.bf16.mxu0 0
      %580 = vmatpush1.bf16.msra.mxu0 0
      %581 = vmatprep.subr.bf16.mxu0 0
      %582 = vmatpush1.bf16.msra.mxu0 0
      %583 = vmatprep.subr.bf16.mxu0 0
      %584 = vmatpush1.bf16.msra.mxu0 0
      %585 = vmatprep.subr.bf16.mxu0 0
      %586 = vmatpush1.bf16.msra.mxu0 0
      %587 = vmatprep.subr.bf16.mxu0 0
      %588 = vmatpush1.bf16.msra.mxu0 0
      %589 = vmatprep.subr.bf16.mxu0 0
      %590 = vmatpush1.bf16.msra.mxu0 0
      %591 = vmatprep.subr.bf16.mxu0 0
      %592 = vmatpush1.bf16.msra.mxu0 0
      %593 = vmatprep.mubr.bf16.mxu0 0
      %594 = vmatmul.mubr.bf16.gmra.mrb[0].mxu0 %v555
      %v595 = vpop.f32.mrb[0].mxu0
      %v596 = vadd.f32 0.0, %v595
      %v597 = vpop.f32.mrb[0].mxu0
      %v598 = vpop.f32.mrb[0].mxu0
      %v599 = vpop.f32.mrb[0].mxu0
      %600 = vdwg.mxu0
      %v601 = vadd.f32 %v551, %v596
      %602 = vst [vmem:[#allocation4] sm:$0xff] %v601
      %603 = vst.msk [vmem:[#allocation2] sm:$0xff] %vm543, %v525
      // Predicated region
      $region45: #{mla_forward.8} parent=39 // pred_check
        %p604 = pneg %p428
      $region46: #{mla_forward.8} parent=39 // pred_check_branch
        %606 = sbr.rel (%p604) target = $region48
      $region47: #{mla_forward.8} parent=39 // pred_region
        %v607 = vld [vmem:[#allocation3] sm:$0xff]
        %v608 = vrcp.pop %v607
        %v609 = vld [vmem:[#allocation4] sm:$0xff]
        %611 = vset.pattern.permute.xlu0 0
        %612 = vperm.xlu0 %611, %v608
        %v613 = vpop.permute.xlu0 %612
        %v615 = vmul.f32 %v609, %v613
        %v616 = vpack.c.bf16 %v615, %v615
        %617 = vst [vmem:[%s425] sm:$0xf] %v616
      $region48: #{mla_forward.8} parent=39 // pred_fallthru
        _
      %s618 = sadd.s32 %s22, %s24
      %p619 = scmp.lt.s32.totalorder %s618, 1
      %s620 = scalar_select %p619, %s618, 1
      %p621 = scmp.lt.s32.totalorder %s23, 1
      %s622 = scalar_select %p621, %s23, 1
      %s623 = smul.addr %s620, 2
      %s624 = sadd.s32 %s622, %s623
      %s625 = smul.addr %s624, 4
      %s626 = scalar_lea.vmem %s5, %s625
      // Predicated region
      $region49: #{mla_forward.8} parent=39 // pred_check
        %p627 = pneg %p214
      $region50: #{mla_forward.8} parent=39 // pred_check_branch
        %629 = sbr.rel (%p627) target = $region52
      $region51: #{mla_forward.8} parent=39 // pred_region
        %s630 = sadd.s32 %s22, %s24
      $region52: #{mla_forward.8} parent=39 // pred_fallthru
        _
    $region40: #{mla_forward.8} parent=5 // pred_fallthru
      _
    %p631 = scmp.le.s32.totalorder 2, %s11
    // Predicated region
    $region53: #{mla_forward.8} parent=5 // pred_check
      %p632 = pneg %p631
    $region54: #{mla_forward.8} parent=5 // pred_check_branch
      %634 = sbr.rel (%p632) target = $region56
    $region55: #{mla_forward.8} parent=5 // pred_region
      %s635 = ssub.s32 %s11, 2
      // Predicated region
      $region57: #{mla_forward.8} parent=55 // pred_check
        %p636 = pneg %p220
      $region58: #{mla_forward.8} parent=55 // pred_check_branch
        %638 = sbr.rel (%p636) target = $region60
      $region59: #{mla_forward.8} parent=55 // pred_region
        %s639 = sadd.s32 %s26, %s28
        %p640 = scmp.lt.s32.totalorder %s639, 1
        %s641 = scalar_select %p640, %s639, 1
        %p642 = scmp.lt.s32.totalorder %s27, 1
        %s643 = scalar_select %p642, %s27, 1
        %s644 = smul.addr %s641, 2
        %s645 = sadd.s32 %s643, %s644
        %s646 = smul.addr %s645, 4
        %s647 = scalar_lea.vmem %s5, %s646
      $region60: #{mla_forward.8} parent=55 // pred_fallthru
        _
    $region56: #{mla_forward.8} parent=5 // pred_fallthru
      _
  $region6: #{mla_forward.8} parent=0 // loop_footer
    %s15 = sadd.s32 1, %s11
  $region7: #{mla_forward.8} parent=0 // loop_footer_branch
    %10 = sbr.rel target = $region3
  $region8: #{mla_forward.8} parent=0 // loop_exit
    _

</llo_original>
